<compile_context>
chip_gen: v7x
topology: tpu7x:2x2x1
jax: 0.10.0
libtpu: 0.0.40
codegen_flags: <defaults>
</compile_context>

<pallas_src>
import jax
import jax.numpy as jnp
import numpy as np
from jax import lax
from jax.experimental import pallas as pl
from jax.experimental.pallas import tpu as pltpu

PI = 3.141592653589793
PI_PROTATE = 3.1415926235897933  # exact constant used by the reference pRotatE


def _round_up(x, m):
    return ((x + m - 1) // m) * m


def _vmem_capacity_bytes():
    try:
        info = pltpu.get_tpu_info()
        for attr in ("vmem_capacity_bytes", "vmem_size_bytes", "vmem_bytes"):
            v = getattr(info, attr, None)
            if v:
                return int(v)
    except Exception:
        pass
    return 64 * 1024 * 1024  # conservative default (v7x per-TensorCore VMEM)


# ----------------------------------------------------------------------------
# Fused gather + score kernel factory
# ----------------------------------------------------------------------------
def _make_fused_kernel(model_name, mode, *, Bt, Nt, b_axis, n_axis,
                       gamma, embedding_range, modulus):
    """Kernel refs (in order):
         idx_ref : SMEM (Bpad, Npad) int32 negative-entity ids (scalar prefetch)
         rel_ref : VMEM (Bt, 1, Dr) relation of the positive triple
         oth_ref : VMEM (Bt, 1, De) positive entity (tail for head-batch, head
                   for tail-batch)
         ent_ref : HBM  (E, De) full entity table (memory_space=pl.ANY)
         o_ref   : VMEM (Bt, Nt) score tile
         gbuf    : VMEM (Bt, Nt, De) scratch for the gathered negative rows
         sem     : DMA semaphore (1,)
    The gather is single-buffered within a grid step (issue all row DMAs, wait,
    compute); resident inputs / outputs are still double-buffered by Pallas.
    """
    p_scale = PI_PROTATE / embedding_range     # pRotatE phase scale
    r_scale = PI / embedding_range             # RotatE phase scale

    def kernel(idx_ref, rel_ref, oth_ref, ent_ref, o_ref, gbuf, sem):
        bi = pl.program_id(b_axis)
        nj = pl.program_id(n_axis)
        b0 = bi * Bt
        n0 = nj * Nt

        # ---- gather Bt*Nt entity rows HBM -> VMEM (one async DMA per row) ----
        def issue_row(n, b):
            row = idx_ref[b0 + b, n0 + n]
            pltpu.make_async_copy(
                ent_ref.at[pl.ds(row, 1)],          # (1, De) HBM row
                gbuf.at[b, pl.ds(n, 1)],            # (1, De) VMEM slot
                sem.at[0]).start()
            return b

        def issue_batch(b, carry):
            lax.fori_loop(0, Nt, issue_row, b)
            return carry

        lax.fori_loop(0, Bt, issue_batch, 0)

        def wait_row(r, carry):
            pltpu.make_async_copy(
                ent_ref.at[pl.ds(0, 1)], gbuf.at[0, pl.ds(0, 1)],
                sem.at[0]).wait()
            return carry

        lax.fori_loop(0, Bt * Nt, wait_row, 0)

        g = gbuf[...].astype(jnp.float32)      # (Bt, Nt, De) gathered negatives
        rel = rel_ref[...]                      # (Bt, 1, Dr)
        oth = oth_ref[...]                      # (Bt, 1, De)
        head, tail = (g, oth) if mode == "head-batch" else (oth, g)

        if model_name == "TransE":
            head = head * jax.lax.rsqrt(jnp.sum(head * head, axis=2, keepdims=True))
            tail = tail * jax.lax.rsqrt(jnp.sum(tail * tail, axis=2, keepdims=True))
            if mode == "head-batch":
                s = head + (rel - tail)
            else:
                s = head + rel - tail
            score = gamma - jnp.sum(jnp.abs(s), axis=2)

        elif model_name == "DistMult":
            if mode == "head-batch":
                s = head * (rel * tail)
            else:
                s = head * rel * tail
            score = jnp.sum(s, axis=2)

        elif model_name == "pRotatE":
            ph = head * p_scale
            pr = rel * p_scale
            pt = tail * p_scale
            if mode == "head-batch":
                s = ph + (pr - pt)
            else:
                s = ph + pr - pt
            score = gamma - jnp.sum(jnp.abs(jnp.sin(s)), axis=2) * modulus

        elif model_name == "ComplEx":
            dh = head.shape[2] // 2
            dr = rel.shape[2] // 2
            re_h, im_h = head[..., :dh], head[..., dh:]
            re_r, im_r = rel[..., :dr], rel[..., dr:]
            re_t, im_t = tail[..., :dh], tail[..., dh:]
            if mode == "head-batch":
                re_s = re_r * re_t + im_r * im_t
                im_s = re_r * im_t - im_r * re_t
                s = re_h * re_s + im_h * im_s
            else:
                re_s = re_h * re_r - im_h * im_r
                im_s = re_h * im_r + im_h * re_r
                s = re_s * re_t + im_s * im_t
            score = jnp.sum(s, axis=2)

        elif model_name == "RotatE":
            dh = head.shape[2] // 2
            re_h, im_h = head[..., :dh], head[..., dh:]
            re_t, im_t = tail[..., :dh], tail[..., dh:]
            phase = rel * r_scale                       # resident, recompute is cheap
            re_r, im_r = jnp.cos(phase), jnp.sin(phase)
            if mode == "head-batch":
                re_s = re_r * re_t + im_r * im_t - re_h
                im_s = re_r * im_t - im_r * re_t - im_h
            else:
                re_s = re_h * re_r - im_h * im_r - re_t
                im_s = re_h * im_r + im_h * re_r - im_t
            # TODO(synk): on v7x, reduce via an MXU dot with ones(D) instead of
            # jnp.sum(axis=2) to offload the XLU cross-lane reduce.
            score = gamma - jnp.sum(jnp.sqrt(re_s * re_s + im_s * im_s), axis=2)
        else:
            raise ValueError(model_name)

        o_ref[...] = score.astype(o_ref.dtype)

    return kernel


# ----------------------------------------------------------------------------
# Fused forward for the negative-sampling modes
# ----------------------------------------------------------------------------
def _fused_negative_score(model, pos_part, neg_idx, mode):
    name = model.model_name
    ent = model.entity_embedding           # (E, De) f32, stays in HBM
    rel_tab = model.relation_embedding     # (R, Dr)
    De = ent.shape[1]
    Dr = rel_tab.shape[1]
    B, N = neg_idx.shape

    # ---- tile selection: full VMEM footprint (gather scratch + compiler temps
    #      + double-buffered residents + double-buffered output) ---------------
    cap = max(_vmem_capacity_bytes(), 32 * 1024 * 1024)
    budget = int(cap * 0.45)
    temp_factor = 4.0 if name in ("ComplEx", "RotatE") else 3.0

    def footprint(bt, nt):
        return int(4 * (temp_factor * bt * nt * De
                        + 2 * bt * (De + Dr)
                        + 2 * bt * nt))

    Bt = B if B <= 8 else 8
    Npad0 = _round_up(N, 128)              # lane-dense output tiles
    Nt = 128
    for cand in [Npad0] + [c for c in (4096, 2048, 1024, 512, 256, 128) if c < Npad0]:
        if footprint(Bt, cand) <= budget:
            Nt = cand
            break
    # if a grid step still moves little data, grow Bt (fewer steps, bigger DMAs)
    while (B > Bt and Bt < 64
           and Bt * Nt * De * 4 < (2 << 20)
           and footprint(Bt * 2, Nt) <= budget
           and _round_up(B, Bt * 2) - B <= max(8, B // 4)):
        Bt *= 2
    Bpad = _round_up(B, Bt)
    Npad = _round_up(Npad0, Nt)

    # ---- pad only the cheap int32 index arrays (never the embeddings).
    #      Padded positions point at real rows, so no zero-row inf/NaN. --------
    neg_idx = neg_idx.astype(jnp.int32)
    pos_part = pos_part.astype(jnp.int32)
    if Bpad > B:
        pos_part = jnp.concatenate(
            [pos_part,
             jnp.broadcast_to(pos_part[-1:], (Bpad - B,) + pos_part.shape[1:])], axis=0)
        neg_idx = jnp.concatenate(
            [neg_idx, jnp.broadcast_to(neg_idx[-1:], (Bpad - B, N))], axis=0)
    if Npad > N:
        neg_idx = jnp.concatenate(
            [neg_idx, jnp.broadcast_to(neg_idx[:, -1:], (Bpad, Npad - N))], axis=1)

    # ---- resident positive operands: tiny (Bpad, 1, D) gathers in plain JAX --
    res_rel = jnp.take(rel_tab, pos_part[:, 1], axis=0)[:, None, :]
    if mode == "head-batch":
        res_oth = jnp.take(ent, pos_part[:, 2], axis=0)[:, None, :]    # tail
    else:
        res_oth = jnp.take(ent, pos_part[:, 0], axis=0)[:, None, :]    # head

    # ---- grid: put the longer axis outermost so megacore (v7x) can split it --
    nb, nn = Bpad // Bt, Npad // Nt
    if nn > nb:
        grid = (nn, nb)
        b_axis, n_axis = 1, 0
    else:
        grid = (nb, nn)
        b_axis, n_axis = 0, 1

    def res_map(*args):          # args = (*grid_ids, idx_prefetch_ref)
        return (args[b_axis], 0, 0)

    def out_map(*args):
        return (args[b_axis], args[n_axis])

    kernel = _make_fused_kernel(
        name, mode, Bt=Bt, Nt=Nt, b_axis=b_axis, n_axis=n_axis,
        gamma=model.gamma, embedding_range=model.embedding_range,
        modulus=float(model.modulus) if model.modulus is not None else 0.0)

    flops_pe = {"TransE": 6, "DistMult": 3, "ComplEx": 8, "RotatE": 9, "pRotatE": 5}[name]
    trans_pe = {"TransE": 0, "DistMult": 0, "ComplEx": 0, "RotatE": 1, "pRotatE": 1}[name]
    elems = Bpad * Npad * De
    cost = pl.CostEstimate(
        flops=int(flops_pe * elems),
        transcendentals=int(trans_pe * elems),
        bytes_accessed=int(4 * (elems + Bpad * (De + Dr) + Bpad * Npad)))

    # TODO(synk): store the entity table in bf16 (and upcast in-kernel) to halve
    # gather HBM bytes; kept f32 here to preserve the 1e-4 reference tolerance.
    out = pl.pallas_call(
        kernel,
        out_shape=jax.ShapeDtypeStruct((Bpad, Npad), jnp.float32),
        grid_spec=pltpu.PrefetchScalarGridSpec(
            num_scalar_prefetch=1,                       # neg_idx -> SMEM
            grid=grid,
            in_specs=[
                pl.BlockSpec((Bt, 1, Dr), res_map),      # relation (resident)
                pl.BlockSpec((Bt, 1, De), res_map),      # positive entity (resident)
                pl.BlockSpec(memory_space=pl.ANY),       # entity table, raw HBM
            ],
            out_specs=pl.BlockSpec((Bt, Nt), out_map),
            scratch_shapes=[
                pltpu.VMEM((Bt, Nt, De), ent.dtype),     # gather buffer
                pltpu.SemaphoreType.DMA((1,)),
            ],
        ),
        compiler_params=pltpu.CompilerParams(
            dimension_semantics=("parallel", "parallel"),
            vmem_limit_bytes=int(cap * 0.75)),
        cost_estimate=cost,
    )(neg_idx, res_rel, res_oth, ent)
    return out[:B, :N]


# ----------------------------------------------------------------------------
# Pure-JAX scoring (mirrors the PyTorch math) — used for mode='single' and as
# the correctness reference for the fused Pallas path.
# ----------------------------------------------------------------------------
def ref_score(model, head, relation, tail, mode):
    g, er = model.gamma, model.embedding_range
    name = model.model_name
    if name == "TransE":
        head = head / jnp.linalg.norm(head, axis=2, keepdims=True)
        tail = tail / jnp.linalg.norm(tail, axis=2, keepdims=True)
        s = head + (relation - tail) if mode == "head-batch" else head + relation - tail
        return g - jnp.sum(jnp.abs(s), axis=2)
    if name == "DistMult":
        s = head * (relation * tail) if mode == "head-batch" else head * relation * tail
        return jnp.sum(s, axis=2)
    if name == "ComplEx":
        dh = head.shape[2] // 2
        dr = relation.shape[2] // 2
        re_h, im_h = head[..., :dh], head[..., dh:]
        re_r, im_r = relation[..., :dr], relation[..., dr:]
        re_t, im_t = tail[..., :dh], tail[..., dh:]
        if mode == "head-batch":
            re_s = re_r * re_t + im_r * im_t
            im_s = re_r * im_t - im_r * re_t
            s = re_h * re_s + im_h * im_s
        else:
            re_s = re_h * re_r - im_h * im_r
            im_s = re_h * im_r + im_h * re_r
            s = re_s * re_t + im_s * im_t
        return jnp.sum(s, axis=2)
    if name == "RotatE":
        dh = head.shape[2] // 2
        re_h, im_h = head[..., :dh], head[..., dh:]
        re_t, im_t = tail[..., :dh], tail[..., dh:]
        phase = relation / (er / PI)
        re_r, im_r = jnp.cos(phase), jnp.sin(phase)
        if mode == "head-batch":
            re_s = re_r * re_t + im_r * im_t - re_h
            im_s = re_r * im_t - im_r * re_t - im_h
        else:
            re_s = re_h * re_r - im_h * im_r - re_t
            im_s = re_h * im_r + im_h * re_r - im_t
        return g - jnp.sum(jnp.sqrt(re_s ** 2 + im_s ** 2), axis=2)
    if name == "pRotatE":
        ph = head / (er / PI_PROTATE)
        pr = relation / (er / PI_PROTATE)
        pt = tail / (er / PI_PROTATE)
        s = ph + (pr - pt) if mode == "head-batch" else ph + pr - pt
        return g - jnp.sum(jnp.abs(jnp.sin(s)), axis=2) * model.modulus
    raise ValueError(name)


# ----------------------------------------------------------------------------
# KGEModel (JAX side)
# ----------------------------------------------------------------------------
class KGEModelPallas:
    def __init__(self, model_name, num_entities, num_relations, hidden_dim, gamma,
                 double_entity_embedding=False, double_relation_embedding=False,
                 key=None):
        if model_name not in ["TransE", "DistMult", "ComplEx", "RotatE", "pRotatE", "ConvE"]:
            raise ValueError("model %s not supported" % model_name)
        if model_name == "RotatE" and (not double_entity_embedding or double_relation_embedding):
            raise ValueError("RotatE should use --double_entity_embedding")
        if model_name == "ComplEx" and (not double_entity_embedding or not double_relation_embedding):
            raise ValueError("ComplEx should use double entity & relation embedding")

        self.model_name = model_name
        self.num_entities = num_entities
        self.num_relations = num_relations
        self.hidden_dim = hidden_dim
        self.epsilon = 2.0
        self.gamma = float(gamma)
        self.embedding_range = (self.gamma + self.epsilon) / hidden_dim
        self.entity_dim = hidden_dim * 2 if double_entity_embedding else hidden_dim
        self.relation_dim = hidden_dim * 2 if double_relation_embedding else hidden_dim

        k1, k2 = jax.random.split(key)
        r = self.embedding_range
        self.entity_embedding = jax.random.uniform(
            k1, (num_entities, self.entity_dim), jnp.float32, -r, r)
        self.relation_embedding = jax.random.uniform(
            k2, (num_relations, self.relation_dim), jnp.float32, -r, r)
        self.modulus = 0.5 * r if model_name == "pRotatE" else None
        # TODO(synk): ConvE branch (Conv2d+BatchNorm+Dropout+Linear+sigmoid) has
        # no clean single-kernel Pallas equivalent here and is not implemented.

    # ---- embed: plain-JAX gathers (reference path / 'single' mode) -----------
    def embed(self, sample, mode="single"):
        ent, rel = self.entity_embedding, self.relation_embedding
        if mode == "single":
            head = jnp.take(ent, sample[:, 0], axis=0)[:, None, :]
            relation = jnp.take(rel, sample[:, 1], axis=0)[:, None, :]
            tail = jnp.take(ent, sample[:, 2], axis=0)[:, None, :]
        elif mode == "head-batch":
            tail_part, head_part = sample
            B, N = head_part.shape
            head = jnp.take(ent, head_part.reshape(-1), axis=0).reshape(B, N, -1)
            relation = jnp.take(rel, tail_part[:, 1], axis=0)[:, None, :]
            tail = jnp.take(ent, tail_part[:, 2], axis=0)[:, None, :]
        elif mode == "tail-batch":
            head_part, tail_part = sample
            B, N = tail_part.shape
            head = jnp.take(ent, head_part[:, 0], axis=0)[:, None, :]
            relation = jnp.take(rel, head_part[:, 1], axis=0)[:, None, :]
            tail = jnp.take(ent, tail_part.reshape(-1), axis=0).reshape(B, N, -1)
        else:
            raise ValueError("mode %s not supported" % mode)
        return head, relation, tail

    # ---- score on pre-gathered embeddings (plain JAX) ------------------------
    def score(self, head, relation, tail, mode="single"):
        if self.model_name == "ConvE":
            raise NotImplementedError("ConvE score not implemented")
        return ref_score(self, head, relation, tail, mode)

    # ---- forward: fused gather+score Pallas kernel for negative sampling -----
    def forward(self, sample, mode="single"):
        if self.model_name == "ConvE":
            raise NotImplementedError("ConvE forward not implemented")
        if mode == "single":
            # Tiny (B, 1) workload: a lane-padded pallas_call costs more than the
            # fused XLA elementwise+reduce, so keep it in plain JAX.
            head, relation, tail = self.embed(sample, "single")
            return self.score(head, relation, tail, "single")
        if mode not in ("head-batch", "tail-batch"):
            raise ValueError("mode %s not supported" % mode)
        pos_part, neg_idx = sample
        return _fused_negative_score(self, pos_part, neg_idx, mode)


# ----------------------------------------------------------------------------
if __name__ == "__main__":
    key = jax.random.PRNGKey(0)
    keys = jax.random.split(key, 8)

    num_entities, num_relations, hidden_dim, gamma = 50, 10, 64, 12.0
    B, N = 2, 8

    kp1, kp2, kp3, k_neg = keys[4], keys[5], keys[6], keys[7]
    pos = jnp.stack([
        jax.random.randint(kp1, (B,), 0, num_entities),
        jax.random.randint(kp2, (B,), 0, num_relations),
        jax.random.randint(kp3, (B,), 0, num_entities),
    ], axis=1).astype(jnp.int32)
    negs = jax.random.randint(k_neg, (B, N), 0, num_entities).astype(jnp.int32)

    configs = [
        ("RotatE",   dict(double_entity_embedding=True),   "head-batch"),
        ("RotatE",   dict(double_entity_embedding=True),   "single"),
        ("TransE",   dict(),                               "tail-batch"),
        ("DistMult", dict(),                               "head-batch"),
        ("ComplEx",  dict(double_entity_embedding=True,
                          double_relation_embedding=True), "tail-batch"),
        ("pRotatE",  dict(),                               "tail-batch"),
    ]

    for idx, (name, opts, mode) in enumerate(configs):
        model = KGEModelPallas(name, num_entities, num_relations, hidden_dim,
                               gamma, key=keys[idx % 4], **opts)
        sample = pos if mode == "single" else (pos, negs)
        out = jax.block_until_ready(model.forward(sample, mode=mode))
        h, r, t = model.embed(sample, mode=mode)
        ref = ref_score(model, h, r, t, mode)
        np.testing.assert_allclose(np.asarray(out), np.asarray(ref),
                                   rtol=1e-4, atol=1e-4)
        expected_n = 1 if mode == "single" else N
        assert out.shape == (B, expected_n), (name, mode, out.shape)

    print("KERNEL_OK")
</pallas_src>

<mosaic_0001>
module attributes {stable_mosaic.version = 11 : i64} {
  func.func @kernel(%arg0: i32, %arg1: i32, %arg2: memref<2x128xi32, #tpu.memory_space<smem>>, %arg3: memref<2x1x64xf32, #tpu.memory_space<vmem>>, %arg4: memref<2x1x128xf32, #tpu.memory_space<vmem>>, %arg5: memref<50x128xf32, #tpu.memory_space<any>>, %arg6: memref<2x128xf32, #tpu.memory_space<vmem>>, %arg7: memref<2x128x128xf32, #tpu.memory_space<vmem>>, %arg8: memref<1x!tpu.dma_semaphore, #tpu.memory_space<semaphore_mem>>) attributes {dimension_semantics = [#tpu.dimension_semantics<parallel>, #tpu.dimension_semantics<parallel>], iteration_bounds = array<i64: 1, 1>, scalar_prefetch = 1 : i64, scratch_operands = 2 : i64, tpu.core_type = #tpu.core_type<tc>, window_params = [{transform_indices = @transform_0, window_bounds = array<i64: 2, 1, 64>}, {transform_indices = @transform_1, window_bounds = array<i64: 2, 1, 128>}, {}, {transform_indices = @transform_3, window_bounds = array<i64: 2, 128>}]} {
    %c2_i32 = arith.constant 2 : i32
    %0 = arith.muli %arg0, %c2_i32 : i32
    %c128_i32 = arith.constant 128 : i32
    %1 = arith.muli %arg1, %c128_i32 : i32
    %c0_i32 = arith.constant 0 : i32
    %c2_i32_0 = arith.constant 2 : i32
    %2 = arith.addi %c0_i32, %c2_i32_0 : i32
    %c1_i32 = arith.constant 1 : i32
    scf.for %arg9 = %c0_i32 to %2 step %c1_i32  : i32 {
      %c0_i32_16 = arith.constant 0 : i32
      %c128_i32_17 = arith.constant 128 : i32
      %33 = arith.addi %c0_i32_16, %c128_i32_17 : i32
      %c1_i32_18 = arith.constant 1 : i32
      scf.for %arg10 = %c0_i32_16 to %33 step %c1_i32_18  : i32 {
        %34 = arith.addi %0, %arg9 : i32
        %35 = arith.addi %1, %arg10 : i32
        %36 = arith.index_cast %34 : i32 to index
        %37 = arith.index_cast %35 : i32 to index
        %38 = memref.load %arg2[%36, %37] : memref<2x128xi32, #tpu.memory_space<smem>>
        %c0_i32_20 = arith.constant 0 : i32
        %c0_i32_21 = arith.constant 0 : i32
        %39 = tpu.memref_slice %arg5[%38, %c0_i32_21] : memref<50x128xf32, #tpu.memory_space<any>> -> memref<1x128xf32, #tpu.memory_space<any>>
        %c0_i32_22 = arith.constant 0 : i32
        %40 = tpu.memref_slice %arg7[%arg9, %arg10, %c0_i32_22] : memref<2x128x128xf32, #tpu.memory_space<vmem>> -> memref<1x1x128xf32, #tpu.memory_space<vmem>>
        %41 = tpu.memref_squeeze %40 : memref<1x1x128xf32, #tpu.memory_space<vmem>> -> memref<1x128xf32, #tpu.memory_space<vmem>>
        %42 = tpu.memref_slice %arg8[%c0_i32_20] : memref<1x!tpu.dma_semaphore, #tpu.memory_space<semaphore_mem>> -> memref<1x!tpu.dma_semaphore, #tpu.memory_space<semaphore_mem>>
        %43 = tpu.memref_squeeze %42 : memref<1x!tpu.dma_semaphore, #tpu.memory_space<semaphore_mem>> -> memref<!tpu.dma_semaphore, #tpu.memory_space<semaphore_mem>>
        tpu.enqueue_dma source(%39 : memref<1x128xf32, #tpu.memory_space<any>>) target(%41 : memref<1x128xf32, #tpu.memory_space<vmem>>) target_semaphore(%43 : memref<!tpu.dma_semaphore, #tpu.memory_space<semaphore_mem>>)
      }
      %c128_i32_19 = arith.constant 128 : i32
    }
    %c2_i32_1 = arith.constant 2 : i32
    %c0_i32_2 = arith.constant 0 : i32
    %c256_i32 = arith.constant 256 : i32
    %3 = arith.addi %c0_i32_2, %c256_i32 : i32
    %c1_i32_3 = arith.constant 1 : i32
    scf.for %arg9 = %c0_i32_2 to %3 step %c1_i32_3  : i32 {
      %c0_i32_16 = arith.constant 0 : i32
      %c0_i32_17 = arith.constant 0 : i32
      %c0_i32_18 = arith.constant 0 : i32
      %c0_i32_19 = arith.constant 0 : i32
      %33 = tpu.memref_slice %arg5[%c0_i32_18, %c0_i32_19] : memref<50x128xf32, #tpu.memory_space<any>> -> memref<1x128xf32, #tpu.memory_space<any>>
      %c0_i32_20 = arith.constant 0 : i32
      %c0_i32_21 = arith.constant 0 : i32
      %34 = tpu.memref_slice %arg7[%c0_i32_16, %c0_i32_20, %c0_i32_21] : memref<2x128x128xf32, #tpu.memory_space<vmem>> -> memref<1x1x128xf32, #tpu.memory_space<vmem>>
      %35 = tpu.memref_squeeze %34 : memref<1x1x128xf32, #tpu.memory_space<vmem>> -> memref<1x128xf32, #tpu.memory_space<vmem>>
      %36 = tpu.memref_slice %arg8[%c0_i32_17] : memref<1x!tpu.dma_semaphore, #tpu.memory_space<semaphore_mem>> -> memref<1x!tpu.dma_semaphore, #tpu.memory_space<semaphore_mem>>
      %37 = tpu.memref_squeeze %36 : memref<1x!tpu.dma_semaphore, #tpu.memory_space<semaphore_mem>> -> memref<!tpu.dma_semaphore, #tpu.memory_space<semaphore_mem>>
      tpu.wait_dma2 semaphore(%37 : memref<!tpu.dma_semaphore, #tpu.memory_space<semaphore_mem>>) src(%33 : memref<1x128xf32, #tpu.memory_space<any>>) dst(%35 : memref<1x128xf32, #tpu.memory_space<vmem>>)
    }
    %c0 = arith.constant 0 : index
    %c0_4 = arith.constant 0 : index
    %c0_5 = arith.constant 0 : index
    %4 = vector.load %arg7[%c0, %c0_4, %c0_5] : memref<2x128x128xf32, #tpu.memory_space<vmem>>, vector<2x128x128xf32>
    %c0_6 = arith.constant 0 : index
    %c0_7 = arith.constant 0 : index
    %c0_8 = arith.constant 0 : index
    %5 = vector.load %arg3[%c0_6, %c0_7, %c0_8] : memref<2x1x64xf32, #tpu.memory_space<vmem>>, vector<2x1x64xf32>
    %c0_9 = arith.constant 0 : index
    %c0_10 = arith.constant 0 : index
    %c0_11 = arith.constant 0 : index
    %6 = vector.load %arg4[%c0_9, %c0_10, %c0_11] : memref<2x1x128xf32, #tpu.memory_space<vmem>>, vector<2x1x128xf32>
    %7 = vector.extract_strided_slice %4 {offsets = [0, 0, 0], sizes = [2, 128, 64], strides = [1, 1, 1]} : vector<2x128x128xf32> to vector<2x128x64xf32>
    %8 = vector.extract_strided_slice %4 {offsets = [0, 0, 64], sizes = [2, 128, 64], strides = [1, 1, 1]} : vector<2x128x128xf32> to vector<2x128x64xf32>
    %9 = vector.extract_strided_slice %6 {offsets = [0, 0, 0], sizes = [2, 1, 64], strides = [1, 1, 1]} : vector<2x1x128xf32> to vector<2x1x64xf32>
    %10 = vector.extract_strided_slice %6 {offsets = [0, 0, 64], sizes = [2, 1, 64], strides = [1, 1, 1]} : vector<2x1x128xf32> to vector<2x1x64xf32>
    %cst = arith.constant 14.3615665 : f32
    %11 = vector.broadcast %cst : f32 to vector<2x1x64xf32>
    %12 = arith.mulf %5, %11 : vector<2x1x64xf32>
    %13 = math.cos %12 : vector<2x1x64xf32>
    %14 = math.sin %12 : vector<2x1x64xf32>
    %15 = arith.mulf %13, %9 : vector<2x1x64xf32>
    %16 = arith.mulf %14, %10 : vector<2x1x64xf32>
    %17 = arith.addf %15, %16 : vector<2x1x64xf32>
    %18 = vector.broadcast %17 : vector<2x1x64xf32> to vector<2x128x64xf32>
    %19 = arith.subf %18, %7 : vector<2x128x64xf32>
    %20 = arith.mulf %13, %10 : vector<2x1x64xf32>
    %21 = arith.mulf %14, %9 : vector<2x1x64xf32>
    %22 = arith.subf %20, %21 : vector<2x1x64xf32>
    %23 = vector.broadcast %22 : vector<2x1x64xf32> to vector<2x128x64xf32>
    %24 = arith.subf %23, %8 : vector<2x128x64xf32>
    %25 = arith.mulf %19, %19 : vector<2x128x64xf32>
    %26 = arith.mulf %24, %24 : vector<2x128x64xf32>
    %27 = arith.addf %25, %26 : vector<2x128x64xf32>
    %28 = math.sqrt %27 : vector<2x128x64xf32>
    %cst_12 = arith.constant dense<0.000000e+00> : vector<2x128xf32>
    %29 = vector.multi_reduction <add>, %28, %cst_12 [2] : vector<2x128x64xf32> to vector<2x128xf32>
    %cst_13 = arith.constant 1.200000e+01 : f32
    %30 = vector.broadcast %cst_13 : f32 to vector<2x128xf32>
    %31 = arith.subf %30, %29 : vector<2x128xf32>
    %c0_14 = arith.constant 0 : index
    %c0_15 = arith.constant 0 : index
    %32 = vector.load %arg6[%c0_14, %c0_15] : memref<2x128xf32, #tpu.memory_space<vmem>>, vector<2x128xf32>
    tpu.vector_store %arg6[%c0_14, %c0_15], %31 {strides = array<i32>} : memref<2x128xf32, #tpu.memory_space<vmem>>, vector<2x128xf32>,
    return
  }
  func.func @transform_0(%arg0: i32, %arg1: i32, %arg2: memref<2x128xi32, #tpu.memory_space<smem>>) -> (i32, i32, i32) {
    %c0_i32 = arith.constant 0 : i32
    %c0_i32_0 = arith.constant 0 : i32
    %c0_i32_1 = arith.constant 0 : i32
    return %arg0, %c0_i32, %c0_i32_0 : i32, i32, i32
  }
  func.func @transform_1(%arg0: i32, %arg1: i32, %arg2: memref<2x128xi32, #tpu.memory_space<smem>>) -> (i32, i32, i32) {
    %c0_i32 = arith.constant 0 : i32
    %c0_i32_0 = arith.constant 0 : i32
    %c0_i32_1 = arith.constant 0 : i32
    return %arg0, %c0_i32, %c0_i32_0 : i32, i32, i32
  }
  func.func @transform_3(%arg0: i32, %arg1: i32, %arg2: memref<2x128xi32, #tpu.memory_space<smem>>) -> (i32, i32) {
    %c0_i32 = arith.constant 0 : i32
    return %arg0, %arg1 : i32, i32
  }
}

</mosaic_0001>

<llo_original>
// kernel: tpu_custom_call.1
$region0: #{tpu_custom_call.1}
  #allocation0 [shape = 'u32[]', space=smem, size = 0x4, offset = 0x4, fixed_abs, tag = 'smem constant byte address 0x4 - core index']
  #allocation1 [shape = 'u32[144,128]{1,0:T(1,128)}', space=vmem, size = 0x12000, scoped, tag = 'internal scratch']
  #allocation2 [shape = 'f32[2,128,128]{2,1,0:T(8,128)}', space=vmem, size = 0x20000, scoped, tag = 'scratch operand']
  #allocation3 [shape = 's32[1]{0}', space=sflag, size = 0x4, scoped, tag = 'scratch operand']
  #allocation4 [shape = 's32[1]{0}', space=sflag, size = 0x4, scoped, tag = 'scoped memory for tpu_custom_call.1']
  #allocation5 [shape = 'u8[1024]{0}', space=smem, size = 0x400, scoped, tag = 'prefetched SMEM operand 0']
  #allocation8 [shape = 's32[]', space=sflag, size = 0x4, offset = 0, fixed_abs, tag = 'sflag constant byte address 0x0 - dummy sync flag']
  #allocation9 [shape = 's32[]', space=sflag, size = 0x4, offset = 0, fixed_abs, tag = 'sflag constant byte address 0x0 - dummy sync flag']
  #allocation10 [shape = 'u32[]', space=smem, size = 0x4, offset = 0x44, fixed_abs, tag = 'smem constant byte address 0x44 - assertion arg 0']
  #allocation11 [shape = 'u32[]', space=smem, size = 0x4, offset = 0x48, fixed_abs, tag = 'smem constant byte address 0x48 - assertion arg 1']
  %s0 = inlined_call_operand.hbm [shape: s32[2,128], index: 0, kind: input, shape index: {}]
  %s1 = inlined_call_operand.vmem [shape: f32[2,1,64], index: 1, kind: input, shape index: {}]
  %s2 = inlined_call_operand.vmem [shape: f32[2,1,128], index: 2, kind: input, shape index: {}]
  %s3 = inlined_call_operand.hbm [shape: f32[50,128], index: 3, kind: input, shape index: {}]
  %s4 = inlined_call_operand.hbm [shape: f32[2,128], index: 4, kind: output, shape index: {}]
  %s5 = sld [smem:[#allocation0]]
  $region43: #{tpu_custom_call.1} parent=0
    _
  %s7 = ssub.s32 1, %s5
  %s8 = scalar_select 0, %s7, %s5
  %10 = dma.hbm_to_smem %s0, 32, [#allocation5], [#allocation4]
  %11 = dma.done [#allocation4], 32
  %12 = sfence
  $region1: #{tpu_custom_call.1} parent=0
    #allocation6 [shape = 'u8[1024]{0}', space=vmem, size = 0x400, scoped, tag = 'output window, operand 0, single buffered']
    #allocation7 [shape = 's32[1]{0}', space=sflag, size = 0x4, scoped, tag = 'scoped memory for tpu_custom_call.1']
    %13 = vsyncpa [#allocation7], 0
    // Predicated region
    $region2: #{tpu_custom_call.1} parent=1 // pred_check
      _
    $region3: #{tpu_custom_call.1} parent=1 // pred_check_branch
      %15 = sbr.rel (0) target = $region5
    $region4: #{tpu_custom_call.1} parent=1 // pred_region
      _
    $region5: #{tpu_custom_call.1} parent=1 // pred_fallthru
      _
    // Predicated region
    $region6: #{tpu_custom_call.1} parent=1 // pred_check
      _
    $region7: #{tpu_custom_call.1} parent=1 // pred_check_branch
      %17 = sbr.rel (0) target = $region9
    $region8: #{tpu_custom_call.1} parent=1 // pred_region
      _
    $region9: #{tpu_custom_call.1} parent=1 // pred_fallthru
      _
    %s18 = smul.u32 0, 2
    %s19 = smul.u32 0, 128
    loop: start=0, step=1, limit=2
    $region10: #{tpu_custom_call.1} parent=1 // loop_pre_header
      _
    $region11: #{tpu_custom_call.1} parent=1 // loop_header
      %s21 = sphi 0, %s25
      %p22 = scmp.ge.s32.totalorder %s21, 2
    $region12: #{tpu_custom_call.1} parent=1 // loop_header_branch
      %24 = sbr.rel (%p22) target = $region16
    $region13: #{tpu_custom_call.1} parent=1 // loop_body
      loop: start=0, step=1, limit=128
      $region17: #{tpu_custom_call.1} parent=13 // loop_pre_header
        _
      $region18: #{tpu_custom_call.1} parent=13 // loop_header
        %s27 = sphi 0, %s31
        %p28 = scmp.ge.s32.totalorder %s27, 128
      $region19: #{tpu_custom_call.1} parent=13 // loop_header_branch
        %30 = sbr.rel (%p28) target = $region23
      $region20: #{tpu_custom_call.1} parent=13 // loop_body
        %s32 = sadd.s32 %s18, %s21
        %s33 = sadd.s32 %s19, %s27
        %s34 = sshra.s32 %s33, 7
        %s35 = sand.u32 %s33, 127
        %s36 = sadd.s32 %s34, %s32
        %s37 = smul.u32 %s36, 128
        %s38 = sshra.s32 %s33, 7
        %s39 = sand.u32 %s33, 127
        %s40 = sadd.s32 %s37, %s39
        %s41 = sld [smem:[#allocation5 + %s40]]
        %s42 = smul.addr %s41, 16
        %s43 = scalar_lea.hbm %s3, %s42
        %s44 = smul.u32 %s21, 128
        %s45 = sadd.s32 %s27, %s44
        %s46 = scalar_lea.vmem [#allocation2], %s45
        // Predicated region
        $region24: #{tpu_custom_call.1} parent=20 // pred_check
          _
        $region25: #{tpu_custom_call.1} parent=20 // pred_check_branch
          %48 = sbr.rel target = $region27
        $region26: #{tpu_custom_call.1} parent=20 // pred_region
          %49 = sst [smem:[#allocation10]] [#allocation9]
          %50 = sst [smem:[#allocation11]] [#allocation8]
        $region27: #{tpu_custom_call.1} parent=20 // pred_fallthru
          _
        %52 = shalt.err (0)
        %s54 = sshll.u32 %s46, 4
        %s55 = int_to_ptr.vmem [resolvable:$true] %s54
        %57 = dma.hbm_to_vmem [thread:$0]  %s43, 16, %s55, [#allocation3]
      $region21: #{tpu_custom_call.1} parent=13 // loop_footer
        %s31 = sadd.s32 1, %s27
      $region22: #{tpu_custom_call.1} parent=13 // loop_footer_branch
        %26 = sbr.rel target = $region18
      $region23: #{tpu_custom_call.1} parent=13 // loop_exit
        _
    $region14: #{tpu_custom_call.1} parent=1 // loop_footer
      %s25 = sadd.s32 1, %s21
    $region15: #{tpu_custom_call.1} parent=1 // loop_footer_branch
      %20 = sbr.rel target = $region11
    $region16: #{tpu_custom_call.1} parent=1 // loop_exit
      _
    loop: start=0, step=1, limit=256
    $region28: #{tpu_custom_call.1} parent=1 // loop_pre_header
      _
    $region29: #{tpu_custom_call.1} parent=1 // loop_header
      %s59 = sphi 0, %s63
      %p60 = scmp.ge.s32.totalorder %s59, 256
    $region30: #{tpu_custom_call.1} parent=1 // loop_header_branch
      %62 = sbr.rel (%p60) target = $region34
    $region31: #{tpu_custom_call.1} parent=1 // loop_body
      %s64 = smul.u32 1, 1
      %s65 = sshll.u32 %s64, 4
      %66 = dma.done [#allocation3], %s65
    $region32: #{tpu_custom_call.1} parent=1 // loop_footer
      %s63 = sadd.s32 1, %s59
    $region33: #{tpu_custom_call.1} parent=1 // loop_footer_branch
      %58 = sbr.rel target = $region29
    $region34: #{tpu_custom_call.1} parent=1 // loop_exit
      _
    %v67 = vld [vmem:[#allocation2] sm:$0xff]
    %v68 = vld [vmem:[#allocation2 + $0x8] sm:$0xff]
    %v69 = vld [vmem:[#allocation2 + $0x10] sm:$0xff]
    %v70 = vld [vmem:[#allocation2 + $0x18] sm:$0xff]
    %v71 = vld [vmem:[#allocation2 + $0x20] sm:$0xff]
    %v72 = vld [vmem:[#allocation2 + $0x28] sm:$0xff]
    %v73 = vld [vmem:[#allocation2 + $0x30] sm:$0xff]
    %v74 = vld [vmem:[#allocation2 + $0x38] sm:$0xff]
    %v75 = vld [vmem:[#allocation2 + $0x40] sm:$0xff]
    %v76 = vld [vmem:[#allocation2 + $0x48] sm:$0xff]
    %v77 = vld [vmem:[#allocation2 + $0x50] sm:$0xff]
    %v78 = vld [vmem:[#allocation2 + $0x58] sm:$0xff]
    %v79 = vld [vmem:[#allocation2 + $0x60] sm:$0xff]
    %v80 = vld [vmem:[#allocation2 + $0x68] sm:$0xff]
    %v81 = vld [vmem:[#allocation2 + $0x70] sm:$0xff]
    %v82 = vld [vmem:[#allocation2 + $0x78] sm:$0xff]
    %v83 = vld [vmem:[#allocation2 + $0x80] sm:$0xff]
    %v84 = vld [vmem:[#allocation2 + $0x88] sm:$0xff]
    %v85 = vld [vmem:[#allocation2 + $0x90] sm:$0xff]
    %v86 = vld [vmem:[#allocation2 + $0x98] sm:$0xff]
    %v87 = vld [vmem:[#allocation2 + $0xa0] sm:$0xff]
    %v88 = vld [vmem:[#allocation2 + $0xa8] sm:$0xff]
    %v89 = vld [vmem:[#allocation2 + $0xb0] sm:$0xff]
    %v90 = vld [vmem:[#allocation2 + $0xb8] sm:$0xff]
    %v91 = vld [vmem:[#allocation2 + $0xc0] sm:$0xff]
    %v92 = vld [vmem:[#allocation2 + $0xc8] sm:$0xff]
    %v93 = vld [vmem:[#allocation2 + $0xd0] sm:$0xff]
    %v94 = vld [vmem:[#allocation2 + $0xd8] sm:$0xff]
    %v95 = vld [vmem:[#allocation2 + $0xe0] sm:$0xff]
    %v96 = vld [vmem:[#allocation2 + $0xe8] sm:$0xff]
    %v97 = vld [vmem:[#allocation2 + $0xf0] sm:$0xff]
    %v98 = vld [vmem:[#allocation2 + $0xf8] sm:$0xff]
    %v99 = vld [vmem:[%s1] sm:$0x1]
    %v100 = vld [vmem:[%s1 + $0x1] sm:$0x1]
    %v101 = vld [vmem:[%s2] sm:$0x1]
    %v102 = vld [vmem:[%s2 + $0x1] sm:$0x1]
    %v103 = vmul.f32 %v99, 14.361567
    %v104 = vmul.f32 %v100, 14.361567
    %v105 = vand.u32 2147483647, %v103
    %vm106 = vcmp.le.f32.partialorder %v105, 0.7853982
    %vm107 = vcmp.lt.s32.totalorder %v103, 0
    %v108 = vand.u32 %v103, 2139095040
    %v109 = vshrl.u32 %v108, 23
    %v110 = vsub.s32 %v109, 127
    %v111 = vand.u32 2147483647, %v103
    %v112 = vand.u32 %v111, 8388607
    %v113 = vor.u32 %v112, 8388608
    %v114 = vsub.s32 0, %v113
    %v115 = vadd.s32 %v110, 1
    %vm116 = vcmp.gt.s32.totalorder %v115, 0
    %v117 = vsel %vm116, %v115, 0
    %v118 = vshrl.u32 %v117, 5
    %v119 = vand.u32 %v117, 31
    %v120 = vsub.s32 32, %v119
    %v121 = vshrl.u32 683565275, %v120
    %v122 = vshll.u32 683565275, %v119
    %v123 = vshrl.u32 2475754826, %v120
    %v124 = vor.u32 %v122, %v123
    %v125 = vshll.u32 2475754826, %v119
    %v126 = vshrl.u32 2131351028, %v120
    %v127 = vor.u32 %v125, %v126
    %v128 = vshll.u32 2131351028, %v119
    %v129 = vshrl.u32 2102212464, %v120
    %v130 = vor.u32 %v128, %v129
    %v131 = vshll.u32 2102212464, %v119
    %v132 = vshrl.u32 920167782, %v120
    %v133 = vor.u32 %v131, %v132
    %v134 = vshll.u32 920167782, %v119
    %v135 = vshrl.u32 1326507024, %v120
    %v136 = vor.u32 %v134, %v135
    %vm137 = vcmp.lt.s32.totalorder %v118, 1
    %vm138 = vcmp.lt.s32.totalorder %v118, 2
    %vm139 = vcmp.lt.s32.totalorder %v118, 3
    %vm140 = vcmp.lt.s32.totalorder %v118, 4
    %v141 = vsel %vm137, %v121, %v124
    %v142 = vsel %vm140, %v130, 2102212464
    %v143 = vsel %vm139, %v127, %v142
    %v144 = vsel %vm138, %v141, %v143
    %v145 = vsel %vm137, %v124, %v127
    %v146 = vsel %vm140, %v133, 920167782
    %v147 = vsel %vm139, %v130, %v146
    %v148 = vsel %vm138, %v145, %v147
    %v149 = vsel %vm137, %v127, %v130
    %v150 = vsel %vm140, %v136, 1326507024
    %v151 = vsel %vm139, %v133, %v150
    %v152 = vsel %vm138, %v149, %v151
    %v153 = vshll.u32 %v113, 8
    %v154 = vmul.u32.u64.compose %v153, %v152
    %v155 = vextract.low.u32 %v154
    %v156 = vextract.high.u32 %v154
    %v157 = vmul.u32.u64.compose %v153, %v148
    %v158 = vextract.low.u32 %v157
    %v159 = vextract.high.u32 %v157
    %v160 = vmul.u32 %v153, %v144
    %v161 = vadd.s32 %v156, %v158
    %vm162 = vc.u32 %v156, %v158
    %v163 = vadd.s32 %v159, 1
    %v164 = vsel %vm162, %v163, %v159
    %v165 = vadd.s32 %v160, %v164
    %v166 = vadd.s32 %v165, 536870912
    %v167 = vshrl.u32 %v166, 30
    %v168 = vshll.u32 %v167, 30
    %v169 = vsub.s32 %v165, %v168
    %vm170 = vcmp.lt.s32.totalorder %v169, 0
    %v171 = vsub.s32 0, %v169
    %v172 = vsel %vm170, %v171, %v169
    %v173 = vclz %v172
    %v174 = vsub.s32 %v173, 2
    %vm175 = vcmp.gt.s32.totalorder 0, %v174
    %v176 = vsel %vm175, 0, %v174
    %v177 = vsub.s32 32, %v176
    %v178 = vshll.u32 %v169, %v176
    %v179 = vshrl.u32 %v161, %v177
    %v180 = vor.u32 %v178, %v179
    %v181 = vsub.s32 4294967266, %v176
    %v182 = vadd.s32 %v181, 127
    %v183 = vshll.u32 %v182, 23
    %v184 = vor.u32 4788187, %v183
    %v185 = vand.u32 2147483647, %v184
    %v187 = vcvt.s32.f32 %v180
    %v188 = vmul.f32 %v187, %v185
    %v189 = vxor.u32 %v188, 2147483648
    %v190 = vsel %vm107, %v189, %v188
    %v191 = vsub.s32 4, %v167
    %v192 = vsel %vm107, %v191, %v167
    %v193 = vsel %vm106, %v103, %v190
    %v194 = vsel %vm106, 0, %v192
    %v195 = vcosq.f32.pop %v193
    %v196 = vsinq.f32.pop %v193
    %vm197 = vweird.f32 %v103
    %v198 = vand.u32 %v194, 3
    %vm199 = vcmp.lt.s32.totalorder %v198, 2
    %vm200 = vcmp.eq.s32.totalorder %v198, 0
    %v201 = vxor.u32 %v196, 2147483648
    %v202 = vsel %vm200, %v195, %v201
    %vm203 = vcmp.eq.s32.totalorder %v198, 2
    %v204 = vxor.u32 %v195, 2147483648
    %v205 = vsel %vm203, %v204, %v196
    %v206 = vsel %vm199, %v202, %v205
    %v207 = vsel %vm197, nan, %v206
    %v208 = vand.u32 2147483647, %v104
    %vm209 = vcmp.le.f32.partialorder %v208, 0.7853982
    %vm210 = vcmp.lt.s32.totalorder %v104, 0
    %v211 = vand.u32 %v104, 2139095040
    %v212 = vshrl.u32 %v211, 23
    %v213 = vsub.s32 %v212, 127
    %v214 = vand.u32 2147483647, %v104
    %v215 = vand.u32 %v214, 8388607
    %v216 = vor.u32 %v215, 8388608
    %v217 = vsub.s32 0, %v216
    %v218 = vadd.s32 %v213, 1
    %vm219 = vcmp.gt.s32.totalorder %v218, 0
    %v220 = vsel %vm219, %v218, 0
    %v221 = vshrl.u32 %v220, 5
    %v222 = vand.u32 %v220, 31
    %v223 = vsub.s32 32, %v222
    %v224 = vshrl.u32 683565275, %v223
    %v225 = vshll.u32 683565275, %v222
    %v226 = vshrl.u32 2475754826, %v223
    %v227 = vor.u32 %v225, %v226
    %v228 = vshll.u32 2475754826, %v222
    %v229 = vshrl.u32 2131351028, %v223
    %v230 = vor.u32 %v228, %v229
    %v231 = vshll.u32 2131351028, %v222
    %v232 = vshrl.u32 2102212464, %v223
    %v233 = vor.u32 %v231, %v232
    %v234 = vshll.u32 2102212464, %v222
    %v235 = vshrl.u32 920167782, %v223
    %v236 = vor.u32 %v234, %v235
    %v237 = vshll.u32 920167782, %v222
    %v238 = vshrl.u32 1326507024, %v223
    %v239 = vor.u32 %v237, %v238
    %vm240 = vcmp.lt.s32.totalorder %v221, 1
    %vm241 = vcmp.lt.s32.totalorder %v221, 2
    %vm242 = vcmp.lt.s32.totalorder %v221, 3
    %vm243 = vcmp.lt.s32.totalorder %v221, 4
    %v244 = vsel %vm240, %v224, %v227
    %v245 = vsel %vm243, %v233, 2102212464
    %v246 = vsel %vm242, %v230, %v245
    %v247 = vsel %vm241, %v244, %v246
    %v248 = vsel %vm240, %v227, %v230
    %v249 = vsel %vm243, %v236, 920167782
    %v250 = vsel %vm242, %v233, %v249
    %v251 = vsel %vm241, %v248, %v250
    %v252 = vsel %vm240, %v230, %v233
    %v253 = vsel %vm243, %v239, 1326507024
    %v254 = vsel %vm242, %v236, %v253
    %v255 = vsel %vm241, %v252, %v254
    %v256 = vshll.u32 %v216, 8
    %v257 = vmul.u32.u64.compose %v256, %v255
    %v258 = vextract.low.u32 %v257
    %v259 = vextract.high.u32 %v257
    %v260 = vmul.u32.u64.compose %v256, %v251
    %v261 = vextract.low.u32 %v260
    %v262 = vextract.high.u32 %v260
    %v263 = vmul.u32 %v256, %v247
    %v264 = vadd.s32 %v259, %v261
    %vm265 = vc.u32 %v259, %v261
    %v266 = vadd.s32 %v262, 1
    %v267 = vsel %vm265, %v266, %v262
    %v268 = vadd.s32 %v263, %v267
    %v269 = vadd.s32 %v268, 536870912
    %v270 = vshrl.u32 %v269, 30
    %v271 = vshll.u32 %v270, 30
    %v272 = vsub.s32 %v268, %v271
    %vm273 = vcmp.lt.s32.totalorder %v272, 0
    %v274 = vsub.s32 0, %v272
    %v275 = vsel %vm273, %v274, %v272
    %v276 = vclz %v275
    %v277 = vsub.s32 %v276, 2
    %vm278 = vcmp.gt.s32.totalorder 0, %v277
    %v279 = vsel %vm278, 0, %v277
    %v280 = vsub.s32 32, %v279
    %v281 = vshll.u32 %v272, %v279
    %v282 = vshrl.u32 %v264, %v280
    %v283 = vor.u32 %v281, %v282
    %v284 = vsub.s32 4294967266, %v279
    %v285 = vadd.s32 %v284, 127
    %v286 = vshll.u32 %v285, 23
    %v287 = vor.u32 4788187, %v286
    %v288 = vand.u32 2147483647, %v287
    %v290 = vcvt.s32.f32 %v283
    %v291 = vmul.f32 %v290, %v288
    %v292 = vxor.u32 %v291, 2147483648
    %v293 = vsel %vm210, %v292, %v291
    %v294 = vsub.s32 4, %v270
    %v295 = vsel %vm210, %v294, %v270
    %v296 = vsel %vm209, %v104, %v293
    %v297 = vsel %vm209, 0, %v295
    %v298 = vcosq.f32.pop %v296
    %v299 = vsinq.f32.pop %v296
    %vm300 = vweird.f32 %v104
    %v301 = vand.u32 %v297, 3
    %vm302 = vcmp.lt.s32.totalorder %v301, 2
    %vm303 = vcmp.eq.s32.totalorder %v301, 0
    %v304 = vxor.u32 %v299, 2147483648
    %v305 = vsel %vm303, %v298, %v304
    %vm306 = vcmp.eq.s32.totalorder %v301, 2
    %v307 = vxor.u32 %v298, 2147483648
    %v308 = vsel %vm306, %v307, %v299
    %v309 = vsel %vm302, %v305, %v308
    %v310 = vsel %vm300, nan, %v309
    %v311 = vand.u32 2147483647, %v103
    %vm312 = vcmp.le.f32.partialorder %v311, 0.7853982
    %vm313 = vcmp.lt.s32.totalorder %v103, 0
    %v314 = vand.u32 %v103, 2139095040
    %v315 = vshrl.u32 %v314, 23
    %v316 = vsub.s32 %v315, 127
    %v317 = vand.u32 2147483647, %v103
    %v318 = vand.u32 %v317, 8388607
    %v319 = vor.u32 %v318, 8388608
    %v320 = vsub.s32 0, %v319
    %v321 = vadd.s32 %v316, 1
    %vm322 = vcmp.gt.s32.totalorder %v321, 0
    %v323 = vsel %vm322, %v321, 0
    %v324 = vshrl.u32 %v323, 5
    %v325 = vand.u32 %v323, 31
    %v326 = vsub.s32 32, %v325
    %v327 = vshrl.u32 683565275, %v326
    %v328 = vshll.u32 683565275, %v325
    %v329 = vshrl.u32 2475754826, %v326
    %v330 = vor.u32 %v328, %v329
    %v331 = vshll.u32 2475754826, %v325
    %v332 = vshrl.u32 2131351028, %v326
    %v333 = vor.u32 %v331, %v332
    %v334 = vshll.u32 2131351028, %v325
    %v335 = vshrl.u32 2102212464, %v326
    %v336 = vor.u32 %v334, %v335
    %v337 = vshll.u32 2102212464, %v325
    %v338 = vshrl.u32 920167782, %v326
    %v339 = vor.u32 %v337, %v338
    %v340 = vshll.u32 920167782, %v325
    %v341 = vshrl.u32 1326507024, %v326
    %v342 = vor.u32 %v340, %v341
    %vm343 = vcmp.lt.s32.totalorder %v324, 1
    %vm344 = vcmp.lt.s32.totalorder %v324, 2
    %vm345 = vcmp.lt.s32.totalorder %v324, 3
    %vm346 = vcmp.lt.s32.totalorder %v324, 4
    %v347 = vsel %vm343, %v327, %v330
    %v348 = vsel %vm346, %v336, 2102212464
    %v349 = vsel %vm345, %v333, %v348
    %v350 = vsel %vm344, %v347, %v349
    %v351 = vsel %vm343, %v330, %v333
    %v352 = vsel %vm346, %v339, 920167782
    %v353 = vsel %vm345, %v336, %v352
    %v354 = vsel %vm344, %v351, %v353
    %v355 = vsel %vm343, %v333, %v336
    %v356 = vsel %vm346, %v342, 1326507024
    %v357 = vsel %vm345, %v339, %v356
    %v358 = vsel %vm344, %v355, %v357
    %v359 = vshll.u32 %v319, 8
    %v360 = vmul.u32.u64.compose %v359, %v358
    %v361 = vextract.low.u32 %v360
    %v362 = vextract.high.u32 %v360
    %v363 = vmul.u32.u64.compose %v359, %v354
    %v364 = vextract.low.u32 %v363
    %v365 = vextract.high.u32 %v363
    %v366 = vmul.u32 %v359, %v350
    %v367 = vadd.s32 %v362, %v364
    %vm368 = vc.u32 %v362, %v364
    %v369 = vadd.s32 %v365, 1
    %v370 = vsel %vm368, %v369, %v365
    %v371 = vadd.s32 %v366, %v370
    %v372 = vadd.s32 %v371, 536870912
    %v373 = vshrl.u32 %v372, 30
    %v374 = vshll.u32 %v373, 30
    %v375 = vsub.s32 %v371, %v374
    %vm376 = vcmp.lt.s32.totalorder %v375, 0
    %v377 = vsub.s32 0, %v375
    %v378 = vsel %vm376, %v377, %v375
    %v379 = vclz %v378
    %v380 = vsub.s32 %v379, 2
    %vm381 = vcmp.gt.s32.totalorder 0, %v380
    %v382 = vsel %vm381, 0, %v380
    %v383 = vsub.s32 32, %v382
    %v384 = vshll.u32 %v375, %v382
    %v385 = vshrl.u32 %v367, %v383
    %v386 = vor.u32 %v384, %v385
    %v387 = vsub.s32 4294967266, %v382
    %v388 = vadd.s32 %v387, 127
    %v389 = vshll.u32 %v388, 23
    %v390 = vor.u32 4788187, %v389
    %v391 = vand.u32 2147483647, %v390
    %v393 = vcvt.s32.f32 %v386
    %v394 = vmul.f32 %v393, %v391
    %v395 = vxor.u32 %v394, 2147483648
    %v396 = vsel %vm313, %v395, %v394
    %v397 = vsub.s32 4, %v373
    %v398 = vsel %vm313, %v397, %v373
    %v399 = vsel %vm312, %v103, %v396
    %v400 = vsel %vm312, 0, %v398
    %v401 = vcosq.f32.pop %v399
    %v402 = vsinq.f32.pop %v399
    %vm403 = vweird.f32 %v103
    %v404 = vadd.s32 %v400, 3
    %v405 = vand.u32 %v404, 3
    %vm406 = vcmp.lt.s32.totalorder %v405, 2
    %vm407 = vcmp.eq.s32.totalorder %v405, 0
    %v408 = vxor.u32 %v402, 2147483648
    %v409 = vsel %vm407, %v401, %v408
    %vm410 = vcmp.eq.s32.totalorder %v405, 2
    %v411 = vxor.u32 %v401, 2147483648
    %v412 = vsel %vm410, %v411, %v402
    %v413 = vsel %vm406, %v409, %v412
    %v414 = vsel %vm403, nan, %v413
    %v415 = vand.u32 2147483647, %v104
    %vm416 = vcmp.le.f32.partialorder %v415, 0.7853982
    %vm417 = vcmp.lt.s32.totalorder %v104, 0
    %v418 = vand.u32 %v104, 2139095040
    %v419 = vshrl.u32 %v418, 23
    %v420 = vsub.s32 %v419, 127
    %v421 = vand.u32 2147483647, %v104
    %v422 = vand.u32 %v421, 8388607
    %v423 = vor.u32 %v422, 8388608
    %v424 = vsub.s32 0, %v423
    %v425 = vadd.s32 %v420, 1
    %vm426 = vcmp.gt.s32.totalorder %v425, 0
    %v427 = vsel %vm426, %v425, 0
    %v428 = vshrl.u32 %v427, 5
    %v429 = vand.u32 %v427, 31
    %v430 = vsub.s32 32, %v429
    %v431 = vshrl.u32 683565275, %v430
    %v432 = vshll.u32 683565275, %v429
    %v433 = vshrl.u32 2475754826, %v430
    %v434 = vor.u32 %v432, %v433
    %v435 = vshll.u32 2475754826, %v429
    %v436 = vshrl.u32 2131351028, %v430
    %v437 = vor.u32 %v435, %v436
    %v438 = vshll.u32 2131351028, %v429
    %v439 = vshrl.u32 2102212464, %v430
    %v440 = vor.u32 %v438, %v439
    %v441 = vshll.u32 2102212464, %v429
    %v442 = vshrl.u32 920167782, %v430
    %v443 = vor.u32 %v441, %v442
    %v444 = vshll.u32 920167782, %v429
    %v445 = vshrl.u32 1326507024, %v430
    %v446 = vor.u32 %v444, %v445
    %vm447 = vcmp.lt.s32.totalorder %v428, 1
    %vm448 = vcmp.lt.s32.totalorder %v428, 2
    %vm449 = vcmp.lt.s32.totalorder %v428, 3
    %vm450 = vcmp.lt.s32.totalorder %v428, 4
    %v451 = vsel %vm447, %v431, %v434
    %v452 = vsel %vm450, %v440, 2102212464
    %v453 = vsel %vm449, %v437, %v452
    %v454 = vsel %vm448, %v451, %v453
    %v455 = vsel %vm447, %v434, %v437
    %v456 = vsel %vm450, %v443, 920167782
    %v457 = vsel %vm449, %v440, %v456
    %v458 = vsel %vm448, %v455, %v457
    %v459 = vsel %vm447, %v437, %v440
    %v460 = vsel %vm450, %v446, 1326507024
    %v461 = vsel %vm449, %v443, %v460
    %v462 = vsel %vm448, %v459, %v461
    %v463 = vshll.u32 %v423, 8
    %v464 = vmul.u32.u64.compose %v463, %v462
    %v465 = vextract.low.u32 %v464
    %v466 = vextract.high.u32 %v464
    %v467 = vmul.u32.u64.compose %v463, %v458
    %v468 = vextract.low.u32 %v467
    %v469 = vextract.high.u32 %v467
    %v470 = vmul.u32 %v463, %v454
    %v471 = vadd.s32 %v466, %v468
    %vm472 = vc.u32 %v466, %v468
    %v473 = vadd.s32 %v469, 1
    %v474 = vsel %vm472, %v473, %v469
    %v475 = vadd.s32 %v470, %v474
    %v476 = vadd.s32 %v475, 536870912
    %v477 = vshrl.u32 %v476, 30
    %v478 = vshll.u32 %v477, 30
    %v479 = vsub.s32 %v475, %v478
    %vm480 = vcmp.lt.s32.totalorder %v479, 0
    %v481 = vsub.s32 0, %v479
    %v482 = vsel %vm480, %v481, %v479
    %v483 = vclz %v482
    %v484 = vsub.s32 %v483, 2
    %vm485 = vcmp.gt.s32.totalorder 0, %v484
    %v486 = vsel %vm485, 0, %v484
    %v487 = vsub.s32 32, %v486
    %v488 = vshll.u32 %v479, %v486
    %v489 = vshrl.u32 %v471, %v487
    %v490 = vor.u32 %v488, %v489
    %v491 = vsub.s32 4294967266, %v486
    %v492 = vadd.s32 %v491, 127
    %v493 = vshll.u32 %v492, 23
    %v494 = vor.u32 4788187, %v493
    %v495 = vand.u32 2147483647, %v494
    %v497 = vcvt.s32.f32 %v490
    %v498 = vmul.f32 %v497, %v495
    %v499 = vxor.u32 %v498, 2147483648
    %v500 = vsel %vm417, %v499, %v498
    %v501 = vsub.s32 4, %v477
    %v502 = vsel %vm417, %v501, %v477
    %v503 = vsel %vm416, %v104, %v500
    %v504 = vsel %vm416, 0, %v502
    %v505 = vcosq.f32.pop %v503
    %v506 = vsinq.f32.pop %v503
    %vm507 = vweird.f32 %v104
    %v508 = vadd.s32 %v504, 3
    %v509 = vand.u32 %v508, 3
    %vm510 = vcmp.lt.s32.totalorder %v509, 2
    %vm511 = vcmp.eq.s32.totalorder %v509, 0
    %v512 = vxor.u32 %v506, 2147483648
    %v513 = vsel %vm511, %v505, %v512
    %vm514 = vcmp.eq.s32.totalorder %v509, 2
    %v515 = vxor.u32 %v505, 2147483648
    %v516 = vsel %vm514, %v515, %v506
    %v517 = vsel %vm510, %v513, %v516
    %v518 = vsel %vm507, nan, %v517
    %v519 = vmul.f32 %v207, %v101
    %v520 = vmul.f32 %v310, %v102
    %523 = vrot.lane.b32.xlu0 %v101, 64
    %v524 = vpop.permute.xlu0 %523
    %525 = vrot.lane.b32.xlu0 %v102, 64
    %v526 = vpop.permute.xlu0 %525
    %v529 = vmul.f32 %v414, %v524
    %v530 = vmul.f32 %v518, %v526
    %v531 = vadd.f32 %v519, %v529
    %v532 = vadd.f32 %v520, %v530
    %v535 = vlaneseq
    %v536 = vshrl.u32 %v535, 7
    %v537 = vsub.s32 0, %v536
    %v538 = vrot.slane %v531, %v537
    %v539 = vlaneseq
    %v540 = vshrl.u32 %v539, 7
    %v541 = vsub.s32 0, %v540
    %v542 = vrot.slane %v532, %v541
    %v545 = vsub.f32 %v538, %v67
    %v546 = vsub.f32 %v538, %v68
    %v547 = vsub.f32 %v538, %v69
    %v548 = vsub.f32 %v538, %v70
    %v549 = vsub.f32 %v538, %v71
    %v550 = vsub.f32 %v538, %v72
    %v551 = vsub.f32 %v538, %v73
    %v552 = vsub.f32 %v538, %v74
    %v553 = vsub.f32 %v538, %v75
    %v554 = vsub.f32 %v538, %v76
    %v555 = vsub.f32 %v538, %v77
    %v556 = vsub.f32 %v538, %v78
    %v557 = vsub.f32 %v538, %v79
    %v558 = vsub.f32 %v538, %v80
    %v559 = vsub.f32 %v538, %v81
    %v560 = vsub.f32 %v538, %v82
    %v561 = vsub.f32 %v542, %v83
    %v562 = vsub.f32 %v542, %v84
    %v563 = vsub.f32 %v542, %v85
    %v564 = vsub.f32 %v542, %v86
    %v565 = vsub.f32 %v542, %v87
    %v566 = vsub.f32 %v542, %v88
    %v567 = vsub.f32 %v542, %v89
    %v568 = vsub.f32 %v542, %v90
    %v569 = vsub.f32 %v542, %v91
    %v570 = vsub.f32 %v542, %v92
    %v571 = vsub.f32 %v542, %v93
    %v572 = vsub.f32 %v542, %v94
    %v573 = vsub.f32 %v542, %v95
    %v574 = vsub.f32 %v542, %v96
    %v575 = vsub.f32 %v542, %v97
    %v576 = vsub.f32 %v542, %v98
    %v577 = vmul.f32 %v207, %v524
    %v578 = vmul.f32 %v310, %v526
    %v579 = vmul.f32 %v414, %v101
    %v580 = vmul.f32 %v518, %v102
    %v581 = vsub.f32 %v577, %v579
    %v582 = vsub.f32 %v578, %v580
    %v585 = vlaneseq
    %v586 = vshrl.u32 %v585, 7
    %v587 = vsub.s32 0, %v586
    %v588 = vrot.slane %v581, %v587
    %v589 = vlaneseq
    %v590 = vshrl.u32 %v589, 7
    %v591 = vsub.s32 0, %v590
    %v592 = vrot.slane %v582, %v591
    %627 = vrot.lane.b32.xlu0 %v67, 64
    %v628 = vpop.permute.xlu0 %627
    %629 = vrot.lane.b32.xlu0 %v68, 64
    %v630 = vpop.permute.xlu0 %629
    %631 = vrot.lane.b32.xlu0 %v69, 64
    %v632 = vpop.permute.xlu0 %631
    %633 = vrot.lane.b32.xlu0 %v70, 64
    %v634 = vpop.permute.xlu0 %633
    %635 = vrot.lane.b32.xlu0 %v71, 64
    %v636 = vpop.permute.xlu0 %635
    %637 = vrot.lane.b32.xlu0 %v72, 64
    %v638 = vpop.permute.xlu0 %637
    %639 = vrot.lane.b32.xlu0 %v73, 64
    %v640 = vpop.permute.xlu0 %639
    %641 = vrot.lane.b32.xlu0 %v74, 64
    %v642 = vpop.permute.xlu0 %641
    %643 = vrot.lane.b32.xlu0 %v75, 64
    %v644 = vpop.permute.xlu0 %643
    %645 = vrot.lane.b32.xlu0 %v76, 64
    %v646 = vpop.permute.xlu0 %645
    %647 = vrot.lane.b32.xlu0 %v77, 64
    %v648 = vpop.permute.xlu0 %647
    %649 = vrot.lane.b32.xlu0 %v78, 64
    %v650 = vpop.permute.xlu0 %649
    %651 = vrot.lane.b32.xlu0 %v79, 64
    %v652 = vpop.permute.xlu0 %651
    %653 = vrot.lane.b32.xlu0 %v80, 64
    %v654 = vpop.permute.xlu0 %653
    %655 = vrot.lane.b32.xlu0 %v81, 64
    %v656 = vpop.permute.xlu0 %655
    %657 = vrot.lane.b32.xlu0 %v82, 64
    %v658 = vpop.permute.xlu0 %657
    %659 = vrot.lane.b32.xlu0 %v83, 64
    %v660 = vpop.permute.xlu0 %659
    %661 = vrot.lane.b32.xlu0 %v84, 64
    %v662 = vpop.permute.xlu0 %661
    %663 = vrot.lane.b32.xlu0 %v85, 64
    %v664 = vpop.permute.xlu0 %663
    %665 = vrot.lane.b32.xlu0 %v86, 64
    %v666 = vpop.permute.xlu0 %665
    %667 = vrot.lane.b32.xlu0 %v87, 64
    %v668 = vpop.permute.xlu0 %667
    %669 = vrot.lane.b32.xlu0 %v88, 64
    %v670 = vpop.permute.xlu0 %669
    %671 = vrot.lane.b32.xlu0 %v89, 64
    %v672 = vpop.permute.xlu0 %671
    %673 = vrot.lane.b32.xlu0 %v90, 64
    %v674 = vpop.permute.xlu0 %673
    %675 = vrot.lane.b32.xlu0 %v91, 64
    %v676 = vpop.permute.xlu0 %675
    %677 = vrot.lane.b32.xlu0 %v92, 64
    %v678 = vpop.permute.xlu0 %677
    %679 = vrot.lane.b32.xlu0 %v93, 64
    %v680 = vpop.permute.xlu0 %679
    %681 = vrot.lane.b32.xlu0 %v94, 64
    %v682 = vpop.permute.xlu0 %681
    %683 = vrot.lane.b32.xlu0 %v95, 64
    %v684 = vpop.permute.xlu0 %683
    %685 = vrot.lane.b32.xlu0 %v96, 64
    %v686 = vpop.permute.xlu0 %685
    %687 = vrot.lane.b32.xlu0 %v97, 64
    %v688 = vpop.permute.xlu0 %687
    %689 = vrot.lane.b32.xlu0 %v98, 64
    %v690 = vpop.permute.xlu0 %689
    %v723 = vsub.f32 %v588, %v628
    %v724 = vsub.f32 %v588, %v630
    %v725 = vsub.f32 %v588, %v632
    %v726 = vsub.f32 %v588, %v634
    %v727 = vsub.f32 %v588, %v636
    %v728 = vsub.f32 %v588, %v638
    %v729 = vsub.f32 %v588, %v640
    %v730 = vsub.f32 %v588, %v642
    %v731 = vsub.f32 %v588, %v644
    %v732 = vsub.f32 %v588, %v646
    %v733 = vsub.f32 %v588, %v648
    %v734 = vsub.f32 %v588, %v650
    %v735 = vsub.f32 %v588, %v652
    %v736 = vsub.f32 %v588, %v654
    %v737 = vsub.f32 %v588, %v656
    %v738 = vsub.f32 %v588, %v658
    %v739 = vsub.f32 %v592, %v660
    %v740 = vsub.f32 %v592, %v662
    %v741 = vsub.f32 %v592, %v664
    %v742 = vsub.f32 %v592, %v666
    %v743 = vsub.f32 %v592, %v668
    %v744 = vsub.f32 %v592, %v670
    %v745 = vsub.f32 %v592, %v672
    %v746 = vsub.f32 %v592, %v674
    %v747 = vsub.f32 %v592, %v676
    %v748 = vsub.f32 %v592, %v678
    %v749 = vsub.f32 %v592, %v680
    %v750 = vsub.f32 %v592, %v682
    %v751 = vsub.f32 %v592, %v684
    %v752 = vsub.f32 %v592, %v686
    %v753 = vsub.f32 %v592, %v688
    %v754 = vsub.f32 %v592, %v690
    %v755 = vmul.f32 %v545, %v545
    %v756 = vmul.f32 %v546, %v546
    %v757 = vmul.f32 %v547, %v547
    %v758 = vmul.f32 %v548, %v548
    %v759 = vmul.f32 %v549, %v549
    %v760 = vmul.f32 %v550, %v550
    %v761 = vmul.f32 %v551, %v551
    %v762 = vmul.f32 %v552, %v552
    %v763 = vmul.f32 %v553, %v553
    %v764 = vmul.f32 %v554, %v554
    %v765 = vmul.f32 %v555, %v555
    %v766 = vmul.f32 %v556, %v556
    %v767 = vmul.f32 %v557, %v557
    %v768 = vmul.f32 %v558, %v558
    %v769 = vmul.f32 %v559, %v559
    %v770 = vmul.f32 %v560, %v560
    %v771 = vmul.f32 %v561, %v561
    %v772 = vmul.f32 %v562, %v562
    %v773 = vmul.f32 %v563, %v563
    %v774 = vmul.f32 %v564, %v564
    %v775 = vmul.f32 %v565, %v565
    %v776 = vmul.f32 %v566, %v566
    %v777 = vmul.f32 %v567, %v567
    %v778 = vmul.f32 %v568, %v568
    %v779 = vmul.f32 %v569, %v569
    %v780 = vmul.f32 %v570, %v570
    %v781 = vmul.f32 %v571, %v571
    %v782 = vmul.f32 %v572, %v572
    %v783 = vmul.f32 %v573, %v573
    %v784 = vmul.f32 %v574, %v574
    %v785 = vmul.f32 %v575, %v575
    %v786 = vmul.f32 %v576, %v576
    %v787 = vmul.f32 %v723, %v723
    %v788 = vmul.f32 %v724, %v724
    %v789 = vmul.f32 %v725, %v725
    %v790 = vmul.f32 %v726, %v726
    %v791 = vmul.f32 %v727, %v727
    %v792 = vmul.f32 %v728, %v728
    %v793 = vmul.f32 %v729, %v729
    %v794 = vmul.f32 %v730, %v730
    %v795 = vmul.f32 %v731, %v731
    %v796 = vmul.f32 %v732, %v732
    %v797 = vmul.f32 %v733, %v733
    %v798 = vmul.f32 %v734, %v734
    %v799 = vmul.f32 %v735, %v735
    %v800 = vmul.f32 %v736, %v736
    %v801 = vmul.f32 %v737, %v737
    %v802 = vmul.f32 %v738, %v738
    %v803 = vmul.f32 %v739, %v739
    %v804 = vmul.f32 %v740, %v740
    %v805 = vmul.f32 %v741, %v741
    %v806 = vmul.f32 %v742, %v742
    %v807 = vmul.f32 %v743, %v743
    %v808 = vmul.f32 %v744, %v744
    %v809 = vmul.f32 %v745, %v745
    %v810 = vmul.f32 %v746, %v746
    %v811 = vmul.f32 %v747, %v747
    %v812 = vmul.f32 %v748, %v748
    %v813 = vmul.f32 %v749, %v749
    %v814 = vmul.f32 %v750, %v750
    %v815 = vmul.f32 %v751, %v751
    %v816 = vmul.f32 %v752, %v752
    %v817 = vmul.f32 %v753, %v753
    %v818 = vmul.f32 %v754, %v754
    %v819 = vadd.f32 %v755, %v787
    %v820 = vadd.f32 %v756, %v788
    %v821 = vadd.f32 %v757, %v789
    %v822 = vadd.f32 %v758, %v790
    %v823 = vadd.f32 %v759, %v791
    %v824 = vadd.f32 %v760, %v792
    %v825 = vadd.f32 %v761, %v793
    %v826 = vadd.f32 %v762, %v794
    %v827 = vadd.f32 %v763, %v795
    %v828 = vadd.f32 %v764, %v796
    %v829 = vadd.f32 %v765, %v797
    %v830 = vadd.f32 %v766, %v798
    %v831 = vadd.f32 %v767, %v799
    %v832 = vadd.f32 %v768, %v800
    %v833 = vadd.f32 %v769, %v801
    %v834 = vadd.f32 %v770, %v802
    %v835 = vadd.f32 %v771, %v803
    %v836 = vadd.f32 %v772, %v804
    %v837 = vadd.f32 %v773, %v805
    %v838 = vadd.f32 %v774, %v806
    %v839 = vadd.f32 %v775, %v807
    %v840 = vadd.f32 %v776, %v808
    %v841 = vadd.f32 %v777, %v809
    %v842 = vadd.f32 %v778, %v810
    %v843 = vadd.f32 %v779, %v811
    %v844 = vadd.f32 %v780, %v812
    %v845 = vadd.f32 %v781, %v813
    %v846 = vadd.f32 %v782, %v814
    %v847 = vadd.f32 %v783, %v815
    %v848 = vadd.f32 %v784, %v816
    %v849 = vadd.f32 %v785, %v817
    %v850 = vadd.f32 %v786, %v818
    %v851 = vrsqrt.pop %v819
    %v852 = vmul.f32 %v819, %v851
    %vm853 = vcmp.eq.f32.partialorder %v819, inf
    %v854 = vsel %vm853, %v819, %v852
    %vm855 = vcmp.eq.f32.partialorder %v819, 0.0
    %v856 = vand.u32 %v819, 2147483648
    %v857 = vsel %vm855, %v856, %v854
    %v858 = vrsqrt.pop %v820
    %v859 = vmul.f32 %v820, %v858
    %vm860 = vcmp.eq.f32.partialorder %v820, inf
    %v861 = vsel %vm860, %v820, %v859
    %vm862 = vcmp.eq.f32.partialorder %v820, 0.0
    %v863 = vand.u32 %v820, 2147483648
    %v864 = vsel %vm862, %v863, %v861
    %v865 = vrsqrt.pop %v821
    %v866 = vmul.f32 %v821, %v865
    %vm867 = vcmp.eq.f32.partialorder %v821, inf
    %v868 = vsel %vm867, %v821, %v866
    %vm869 = vcmp.eq.f32.partialorder %v821, 0.0
    %v870 = vand.u32 %v821, 2147483648
    %v871 = vsel %vm869, %v870, %v868
    %v872 = vrsqrt.pop %v822
    %v873 = vmul.f32 %v822, %v872
    %vm874 = vcmp.eq.f32.partialorder %v822, inf
    %v875 = vsel %vm874, %v822, %v873
    %vm876 = vcmp.eq.f32.partialorder %v822, 0.0
    %v877 = vand.u32 %v822, 2147483648
    %v878 = vsel %vm876, %v877, %v875
    %v879 = vrsqrt.pop %v823
    %v880 = vmul.f32 %v823, %v879
    %vm881 = vcmp.eq.f32.partialorder %v823, inf
    %v882 = vsel %vm881, %v823, %v880
    %vm883 = vcmp.eq.f32.partialorder %v823, 0.0
    %v884 = vand.u32 %v823, 2147483648
    %v885 = vsel %vm883, %v884, %v882
    %v886 = vrsqrt.pop %v824
    %v887 = vmul.f32 %v824, %v886
    %vm888 = vcmp.eq.f32.partialorder %v824, inf
    %v889 = vsel %vm888, %v824, %v887
    %vm890 = vcmp.eq.f32.partialorder %v824, 0.0
    %v891 = vand.u32 %v824, 2147483648
    %v892 = vsel %vm890, %v891, %v889
    %v893 = vrsqrt.pop %v825
    %v894 = vmul.f32 %v825, %v893
    %vm895 = vcmp.eq.f32.partialorder %v825, inf
    %v896 = vsel %vm895, %v825, %v894
    %vm897 = vcmp.eq.f32.partialorder %v825, 0.0
    %v898 = vand.u32 %v825, 2147483648
    %v899 = vsel %vm897, %v898, %v896
    %v900 = vrsqrt.pop %v826
    %v901 = vmul.f32 %v826, %v900
    %vm902 = vcmp.eq.f32.partialorder %v826, inf
    %v903 = vsel %vm902, %v826, %v901
    %vm904 = vcmp.eq.f32.partialorder %v826, 0.0
    %v905 = vand.u32 %v826, 2147483648
    %v906 = vsel %vm904, %v905, %v903
    %v907 = vrsqrt.pop %v827
    %v908 = vmul.f32 %v827, %v907
    %vm909 = vcmp.eq.f32.partialorder %v827, inf
    %v910 = vsel %vm909, %v827, %v908
    %vm911 = vcmp.eq.f32.partialorder %v827, 0.0
    %v912 = vand.u32 %v827, 2147483648
    %v913 = vsel %vm911, %v912, %v910
    %v914 = vrsqrt.pop %v828
    %v915 = vmul.f32 %v828, %v914
    %vm916 = vcmp.eq.f32.partialorder %v828, inf
    %v917 = vsel %vm916, %v828, %v915
    %vm918 = vcmp.eq.f32.partialorder %v828, 0.0
    %v919 = vand.u32 %v828, 2147483648
    %v920 = vsel %vm918, %v919, %v917
    %v921 = vrsqrt.pop %v829
    %v922 = vmul.f32 %v829, %v921
    %vm923 = vcmp.eq.f32.partialorder %v829, inf
    %v924 = vsel %vm923, %v829, %v922
    %vm925 = vcmp.eq.f32.partialorder %v829, 0.0
    %v926 = vand.u32 %v829, 2147483648
    %v927 = vsel %vm925, %v926, %v924
    %v928 = vrsqrt.pop %v830
    %v929 = vmul.f32 %v830, %v928
    %vm930 = vcmp.eq.f32.partialorder %v830, inf
    %v931 = vsel %vm930, %v830, %v929
    %vm932 = vcmp.eq.f32.partialorder %v830, 0.0
    %v933 = vand.u32 %v830, 2147483648
    %v934 = vsel %vm932, %v933, %v931
    %v935 = vrsqrt.pop %v831
    %v936 = vmul.f32 %v831, %v935
    %vm937 = vcmp.eq.f32.partialorder %v831, inf
    %v938 = vsel %vm937, %v831, %v936
    %vm939 = vcmp.eq.f32.partialorder %v831, 0.0
    %v940 = vand.u32 %v831, 2147483648
    %v941 = vsel %vm939, %v940, %v938
    %v942 = vrsqrt.pop %v832
    %v943 = vmul.f32 %v832, %v942
    %vm944 = vcmp.eq.f32.partialorder %v832, inf
    %v945 = vsel %vm944, %v832, %v943
    %vm946 = vcmp.eq.f32.partialorder %v832, 0.0
    %v947 = vand.u32 %v832, 2147483648
    %v948 = vsel %vm946, %v947, %v945
    %v949 = vrsqrt.pop %v833
    %v950 = vmul.f32 %v833, %v949
    %vm951 = vcmp.eq.f32.partialorder %v833, inf
    %v952 = vsel %vm951, %v833, %v950
    %vm953 = vcmp.eq.f32.partialorder %v833, 0.0
    %v954 = vand.u32 %v833, 2147483648
    %v955 = vsel %vm953, %v954, %v952
    %v956 = vrsqrt.pop %v834
    %v957 = vmul.f32 %v834, %v956
    %vm958 = vcmp.eq.f32.partialorder %v834, inf
    %v959 = vsel %vm958, %v834, %v957
    %vm960 = vcmp.eq.f32.partialorder %v834, 0.0
    %v961 = vand.u32 %v834, 2147483648
    %v962 = vsel %vm960, %v961, %v959
    %v963 = vrsqrt.pop %v835
    %v964 = vmul.f32 %v835, %v963
    %vm965 = vcmp.eq.f32.partialorder %v835, inf
    %v966 = vsel %vm965, %v835, %v964
    %vm967 = vcmp.eq.f32.partialorder %v835, 0.0
    %v968 = vand.u32 %v835, 2147483648
    %v969 = vsel %vm967, %v968, %v966
    %v970 = vrsqrt.pop %v836
    %v971 = vmul.f32 %v836, %v970
    %vm972 = vcmp.eq.f32.partialorder %v836, inf
    %v973 = vsel %vm972, %v836, %v971
    %vm974 = vcmp.eq.f32.partialorder %v836, 0.0
    %v975 = vand.u32 %v836, 2147483648
    %v976 = vsel %vm974, %v975, %v973
    %v977 = vrsqrt.pop %v837
    %v978 = vmul.f32 %v837, %v977
    %vm979 = vcmp.eq.f32.partialorder %v837, inf
    %v980 = vsel %vm979, %v837, %v978
    %vm981 = vcmp.eq.f32.partialorder %v837, 0.0
    %v982 = vand.u32 %v837, 2147483648
    %v983 = vsel %vm981, %v982, %v980
    %v984 = vrsqrt.pop %v838
    %v985 = vmul.f32 %v838, %v984
    %vm986 = vcmp.eq.f32.partialorder %v838, inf
    %v987 = vsel %vm986, %v838, %v985
    %vm988 = vcmp.eq.f32.partialorder %v838, 0.0
    %v989 = vand.u32 %v838, 2147483648
    %v990 = vsel %vm988, %v989, %v987
    %v991 = vrsqrt.pop %v839
    %v992 = vmul.f32 %v839, %v991
    %vm993 = vcmp.eq.f32.partialorder %v839, inf
    %v994 = vsel %vm993, %v839, %v992
    %vm995 = vcmp.eq.f32.partialorder %v839, 0.0
    %v996 = vand.u32 %v839, 2147483648
    %v997 = vsel %vm995, %v996, %v994
    %v998 = vrsqrt.pop %v840
    %v999 = vmul.f32 %v840, %v998
    %vm1000 = vcmp.eq.f32.partialorder %v840, inf
    %v1001 = vsel %vm1000, %v840, %v999
    %vm1002 = vcmp.eq.f32.partialorder %v840, 0.0
    %v1003 = vand.u32 %v840, 2147483648
    %v1004 = vsel %vm1002, %v1003, %v1001
    %v1005 = vrsqrt.pop %v841
    %v1006 = vmul.f32 %v841, %v1005
    %vm1007 = vcmp.eq.f32.partialorder %v841, inf
    %v1008 = vsel %vm1007, %v841, %v1006
    %vm1009 = vcmp.eq.f32.partialorder %v841, 0.0
    %v1010 = vand.u32 %v841, 2147483648
    %v1011 = vsel %vm1009, %v1010, %v1008
    %v1012 = vrsqrt.pop %v842
    %v1013 = vmul.f32 %v842, %v1012
    %vm1014 = vcmp.eq.f32.partialorder %v842, inf
    %v1015 = vsel %vm1014, %v842, %v1013
    %vm1016 = vcmp.eq.f32.partialorder %v842, 0.0
    %v1017 = vand.u32 %v842, 2147483648
    %v1018 = vsel %vm1016, %v1017, %v1015
    %v1019 = vrsqrt.pop %v843
    %v1020 = vmul.f32 %v843, %v1019
    %vm1021 = vcmp.eq.f32.partialorder %v843, inf
    %v1022 = vsel %vm1021, %v843, %v1020
    %vm1023 = vcmp.eq.f32.partialorder %v843, 0.0
    %v1024 = vand.u32 %v843, 2147483648
    %v1025 = vsel %vm1023, %v1024, %v1022
    %v1026 = vrsqrt.pop %v844
    %v1027 = vmul.f32 %v844, %v1026
    %vm1028 = vcmp.eq.f32.partialorder %v844, inf
    %v1029 = vsel %vm1028, %v844, %v1027
    %vm1030 = vcmp.eq.f32.partialorder %v844, 0.0
    %v1031 = vand.u32 %v844, 2147483648
    %v1032 = vsel %vm1030, %v1031, %v1029
    %v1033 = vrsqrt.pop %v845
    %v1034 = vmul.f32 %v845, %v1033
    %vm1035 = vcmp.eq.f32.partialorder %v845, inf
    %v1036 = vsel %vm1035, %v845, %v1034
    %vm1037 = vcmp.eq.f32.partialorder %v845, 0.0
    %v1038 = vand.u32 %v845, 2147483648
    %v1039 = vsel %vm1037, %v1038, %v1036
    %v1040 = vrsqrt.pop %v846
    %v1041 = vmul.f32 %v846, %v1040
    %vm1042 = vcmp.eq.f32.partialorder %v846, inf
    %v1043 = vsel %vm1042, %v846, %v1041
    %vm1044 = vcmp.eq.f32.partialorder %v846, 0.0
    %v1045 = vand.u32 %v846, 2147483648
    %v1046 = vsel %vm1044, %v1045, %v1043
    %v1047 = vrsqrt.pop %v847
    %v1048 = vmul.f32 %v847, %v1047
    %vm1049 = vcmp.eq.f32.partialorder %v847, inf
    %v1050 = vsel %vm1049, %v847, %v1048
    %vm1051 = vcmp.eq.f32.partialorder %v847, 0.0
    %v1052 = vand.u32 %v847, 2147483648
    %v1053 = vsel %vm1051, %v1052, %v1050
    %v1054 = vrsqrt.pop %v848
    %v1055 = vmul.f32 %v848, %v1054
    %vm1056 = vcmp.eq.f32.partialorder %v848, inf
    %v1057 = vsel %vm1056, %v848, %v1055
    %vm1058 = vcmp.eq.f32.partialorder %v848, 0.0
    %v1059 = vand.u32 %v848, 2147483648
    %v1060 = vsel %vm1058, %v1059, %v1057
    %v1061 = vrsqrt.pop %v849
    %v1062 = vmul.f32 %v849, %v1061
    %vm1063 = vcmp.eq.f32.partialorder %v849, inf
    %v1064 = vsel %vm1063, %v849, %v1062
    %vm1065 = vcmp.eq.f32.partialorder %v849, 0.0
    %v1066 = vand.u32 %v849, 2147483648
    %v1067 = vsel %vm1065, %v1066, %v1064
    %v1068 = vrsqrt.pop %v850
    %v1069 = vmul.f32 %v850, %v1068
    %vm1070 = vcmp.eq.f32.partialorder %v850, inf
    %v1071 = vsel %vm1070, %v850, %v1069
    %vm1072 = vcmp.eq.f32.partialorder %v850, 0.0
    %v1073 = vand.u32 %v850, 2147483648
    %v1074 = vsel %vm1072, %v1073, %v1071
    %vm1075 = vcmask 523264
    %v1076 = vsel %vm1075, %v857, 0.0
    %1077 = vadd.xlane.f32.xlu0 %v1076
    %v1078 = vpop.xlane.xlu0 %1077
    %v1079 = vsel %vm1075, %v864, 0.0
    %1080 = vadd.xlane.f32.xlu0 %v1079
    %v1081 = vpop.xlane.xlu0 %1080
    %v1082 = vsel %vm1075, %v871, 0.0
    %1083 = vadd.xlane.f32.xlu0 %v1082
    %v1084 = vpop.xlane.xlu0 %1083
    %v1085 = vsel %vm1075, %v878, 0.0
    %1086 = vadd.xlane.f32.xlu0 %v1085
    %v1087 = vpop.xlane.xlu0 %1086
    %v1088 = vsel %vm1075, %v885, 0.0
    %1089 = vadd.xlane.f32.xlu0 %v1088
    %v1090 = vpop.xlane.xlu0 %1089
    %v1091 = vsel %vm1075, %v892, 0.0
    %1092 = vadd.xlane.f32.xlu0 %v1091
    %v1093 = vpop.xlane.xlu0 %1092
    %v1094 = vsel %vm1075, %v899, 0.0
    %1095 = vadd.xlane.f32.xlu0 %v1094
    %v1096 = vpop.xlane.xlu0 %1095
    %v1097 = vsel %vm1075, %v906, 0.0
    %1098 = vadd.xlane.f32.xlu0 %v1097
    %v1099 = vpop.xlane.xlu0 %1098
    %v1100 = vsel %vm1075, %v913, 0.0
    %1101 = vadd.xlane.f32.xlu0 %v1100
    %v1102 = vpop.xlane.xlu0 %1101
    %v1103 = vsel %vm1075, %v920, 0.0
    %1104 = vadd.xlane.f32.xlu0 %v1103
    %v1105 = vpop.xlane.xlu0 %1104
    %v1106 = vsel %vm1075, %v927, 0.0
    %1107 = vadd.xlane.f32.xlu0 %v1106
    %v1108 = vpop.xlane.xlu0 %1107
    %v1109 = vsel %vm1075, %v934, 0.0
    %1110 = vadd.xlane.f32.xlu0 %v1109
    %v1111 = vpop.xlane.xlu0 %1110
    %v1112 = vsel %vm1075, %v941, 0.0
    %1113 = vadd.xlane.f32.xlu0 %v1112
    %v1114 = vpop.xlane.xlu0 %1113
    %v1115 = vsel %vm1075, %v948, 0.0
    %1116 = vadd.xlane.f32.xlu0 %v1115
    %v1117 = vpop.xlane.xlu0 %1116
    %v1118 = vsel %vm1075, %v955, 0.0
    %1119 = vadd.xlane.f32.xlu0 %v1118
    %v1120 = vpop.xlane.xlu0 %1119
    %v1121 = vsel %vm1075, %v962, 0.0
    %1122 = vadd.xlane.f32.xlu0 %v1121
    %v1123 = vpop.xlane.xlu0 %1122
    %v1124 = vsel %vm1075, %v969, 0.0
    %1125 = vadd.xlane.f32.xlu0 %v1124
    %v1126 = vpop.xlane.xlu0 %1125
    %v1127 = vsel %vm1075, %v976, 0.0
    %1128 = vadd.xlane.f32.xlu0 %v1127
    %v1129 = vpop.xlane.xlu0 %1128
    %v1130 = vsel %vm1075, %v983, 0.0
    %1131 = vadd.xlane.f32.xlu0 %v1130
    %v1132 = vpop.xlane.xlu0 %1131
    %v1133 = vsel %vm1075, %v990, 0.0
    %1134 = vadd.xlane.f32.xlu0 %v1133
    %v1135 = vpop.xlane.xlu0 %1134
    %v1136 = vsel %vm1075, %v997, 0.0
    %1137 = vadd.xlane.f32.xlu0 %v1136
    %v1138 = vpop.xlane.xlu0 %1137
    %v1139 = vsel %vm1075, %v1004, 0.0
    %1140 = vadd.xlane.f32.xlu0 %v1139
    %v1141 = vpop.xlane.xlu0 %1140
    %v1142 = vsel %vm1075, %v1011, 0.0
    %1143 = vadd.xlane.f32.xlu0 %v1142
    %v1144 = vpop.xlane.xlu0 %1143
    %v1145 = vsel %vm1075, %v1018, 0.0
    %1146 = vadd.xlane.f32.xlu0 %v1145
    %v1147 = vpop.xlane.xlu0 %1146
    %v1148 = vsel %vm1075, %v1025, 0.0
    %1149 = vadd.xlane.f32.xlu0 %v1148
    %v1150 = vpop.xlane.xlu0 %1149
    %v1151 = vsel %vm1075, %v1032, 0.0
    %1152 = vadd.xlane.f32.xlu0 %v1151
    %v1153 = vpop.xlane.xlu0 %1152
    %v1154 = vsel %vm1075, %v1039, 0.0
    %1155 = vadd.xlane.f32.xlu0 %v1154
    %v1156 = vpop.xlane.xlu0 %1155
    %v1157 = vsel %vm1075, %v1046, 0.0
    %1158 = vadd.xlane.f32.xlu0 %v1157
    %v1159 = vpop.xlane.xlu0 %1158
    %v1160 = vsel %vm1075, %v1053, 0.0
    %1161 = vadd.xlane.f32.xlu0 %v1160
    %v1162 = vpop.xlane.xlu0 %1161
    %v1163 = vsel %vm1075, %v1060, 0.0
    %1164 = vadd.xlane.f32.xlu0 %v1163
    %v1165 = vpop.xlane.xlu0 %1164
    %v1166 = vsel %vm1075, %v1067, 0.0
    %1167 = vadd.xlane.f32.xlu0 %v1166
    %v1168 = vpop.xlane.xlu0 %1167
    %v1169 = vsel %vm1075, %v1074, 0.0
    %1170 = vadd.xlane.f32.xlu0 %v1169
    %v1171 = vpop.xlane.xlu0 %1170
    %v1172 = vsub.f32 12.0, %v1078
    %v1173 = vsub.f32 12.0, %v1081
    %v1174 = vsub.f32 12.0, %v1084
    %v1175 = vsub.f32 12.0, %v1087
    %v1176 = vsub.f32 12.0, %v1090
    %v1177 = vsub.f32 12.0, %v1093
    %v1178 = vsub.f32 12.0, %v1096
    %v1179 = vsub.f32 12.0, %v1099
    %v1180 = vsub.f32 12.0, %v1102
    %v1181 = vsub.f32 12.0, %v1105
    %v1182 = vsub.f32 12.0, %v1108
    %v1183 = vsub.f32 12.0, %v1111
    %v1184 = vsub.f32 12.0, %v1114
    %v1185 = vsub.f32 12.0, %v1117
    %v1186 = vsub.f32 12.0, %v1120
    %v1187 = vsub.f32 12.0, %v1123
    %v1188 = vsub.f32 12.0, %v1126
    %v1189 = vsub.f32 12.0, %v1129
    %v1190 = vsub.f32 12.0, %v1132
    %v1191 = vsub.f32 12.0, %v1135
    %v1192 = vsub.f32 12.0, %v1138
    %v1193 = vsub.f32 12.0, %v1141
    %v1194 = vsub.f32 12.0, %v1144
    %v1195 = vsub.f32 12.0, %v1147
    %v1196 = vsub.f32 12.0, %v1150
    %v1197 = vsub.f32 12.0, %v1153
    %v1198 = vsub.f32 12.0, %v1156
    %v1199 = vsub.f32 12.0, %v1159
    %v1200 = vsub.f32 12.0, %v1162
    %v1201 = vsub.f32 12.0, %v1165
    %v1202 = vsub.f32 12.0, %v1168
    %v1203 = vsub.f32 12.0, %v1171
    %v1236 = vlaneseq
    %v1237 = vand.u32 %v1236, 127
    %v1238 = vlaneseq
    %v1239 = vshrl.u32 %v1238, 7
    %v1240 = vsub.s32 %v1237, %v1239
    %v1241 = vrot.slane %v1172, %v1240
    %v1242 = vadd.s32 %v1237, 4294967288
    %v1243 = vlaneseq
    %v1244 = vshrl.u32 %v1243, 7
    %v1245 = vsub.s32 %v1242, %v1244
    %v1246 = vrot.slane %v1173, %v1245
    %vm1247 = vcmask 130112
    %v1248 = vsel %vm1247, %v1246, %v1241
    %v1249 = vadd.s32 %v1237, 4294967280
    %v1250 = vlaneseq
    %v1251 = vshrl.u32 %v1250, 7
    %v1252 = vsub.s32 %v1249, %v1251
    %v1253 = vrot.slane %v1174, %v1252
    %vm1254 = vcmask 195712
    %v1255 = vsel %vm1254, %v1253, %v1248
    %v1256 = vadd.s32 %v1237, 4294967272
    %v1257 = vlaneseq
    %v1258 = vshrl.u32 %v1257, 7
    %v1259 = vsub.s32 %v1256, %v1258
    %v1260 = vrot.slane %v1175, %v1259
    %vm1261 = vcmask 261312
    %v1262 = vsel %vm1261, %v1260, %v1255
    %v1263 = vadd.s32 %v1237, 4294967264
    %v1264 = vlaneseq
    %v1265 = vshrl.u32 %v1264, 7
    %v1266 = vsub.s32 %v1263, %v1265
    %v1267 = vrot.slane %v1176, %v1266
    %vm1268 = vcmask 326912
    %v1269 = vsel %vm1268, %v1267, %v1262
    %v1270 = vadd.s32 %v1237, 4294967256
    %v1271 = vlaneseq
    %v1272 = vshrl.u32 %v1271, 7
    %v1273 = vsub.s32 %v1270, %v1272
    %v1274 = vrot.slane %v1177, %v1273
    %vm1275 = vcmask 392512
    %v1276 = vsel %vm1275, %v1274, %v1269
    %v1277 = vadd.s32 %v1237, 4294967248
    %v1278 = vlaneseq
    %v1279 = vshrl.u32 %v1278, 7
    %v1280 = vsub.s32 %v1277, %v1279
    %v1281 = vrot.slane %v1178, %v1280
    %vm1282 = vcmask 458112
    %v1283 = vsel %vm1282, %v1281, %v1276
    %v1284 = vadd.s32 %v1237, 4294967240
    %v1285 = vlaneseq
    %v1286 = vshrl.u32 %v1285, 7
    %v1287 = vsub.s32 %v1284, %v1286
    %v1288 = vrot.slane %v1179, %v1287
    %vm1289 = vcmask 523712
    %v1290 = vsel %vm1289, %v1288, %v1283
    %v1291 = vadd.s32 %v1237, 4294967232
    %v1292 = vlaneseq
    %v1293 = vshrl.u32 %v1292, 7
    %v1294 = vsub.s32 %v1291, %v1293
    %v1295 = vrot.slane %v1180, %v1294
    %vm1296 = vcmask 589312
    %v1297 = vsel %vm1296, %v1295, %v1290
    %v1298 = vadd.s32 %v1237, 4294967224
    %v1299 = vlaneseq
    %v1300 = vshrl.u32 %v1299, 7
    %v1301 = vsub.s32 %v1298, %v1300
    %v1302 = vrot.slane %v1181, %v1301
    %vm1303 = vcmask 654912
    %v1304 = vsel %vm1303, %v1302, %v1297
    %v1305 = vadd.s32 %v1237, 4294967216
    %v1306 = vlaneseq
    %v1307 = vshrl.u32 %v1306, 7
    %v1308 = vsub.s32 %v1305, %v1307
    %v1309 = vrot.slane %v1182, %v1308
    %vm1310 = vcmask 720512
    %v1311 = vsel %vm1310, %v1309, %v1304
    %v1312 = vadd.s32 %v1237, 4294967208
    %v1313 = vlaneseq
    %v1314 = vshrl.u32 %v1313, 7
    %v1315 = vsub.s32 %v1312, %v1314
    %v1316 = vrot.slane %v1183, %v1315
    %vm1317 = vcmask 786112
    %v1318 = vsel %vm1317, %v1316, %v1311
    %v1319 = vadd.s32 %v1237, 4294967200
    %v1320 = vlaneseq
    %v1321 = vshrl.u32 %v1320, 7
    %v1322 = vsub.s32 %v1319, %v1321
    %v1323 = vrot.slane %v1184, %v1322
    %vm1324 = vcmask 851712
    %v1325 = vsel %vm1324, %v1323, %v1318
    %v1326 = vadd.s32 %v1237, 4294967192
    %v1327 = vlaneseq
    %v1328 = vshrl.u32 %v1327, 7
    %v1329 = vsub.s32 %v1326, %v1328
    %v1330 = vrot.slane %v1185, %v1329
    %vm1331 = vcmask 917312
    %v1332 = vsel %vm1331, %v1330, %v1325
    %v1333 = vadd.s32 %v1237, 4294967184
    %v1334 = vlaneseq
    %v1335 = vshrl.u32 %v1334, 7
    %v1336 = vsub.s32 %v1333, %v1335
    %v1337 = vrot.slane %v1186, %v1336
    %vm1338 = vcmask 982912
    %v1339 = vsel %vm1338, %v1337, %v1332
    %v1340 = vadd.s32 %v1237, 4294967176
    %v1341 = vlaneseq
    %v1342 = vshrl.u32 %v1341, 7
    %v1343 = vsub.s32 %v1340, %v1342
    %v1344 = vrot.slane %v1187, %v1343
    %vm1345 = vcmask 1048512
    %v1346 = vsel %vm1345, %v1344, %v1339
    %v1347 = vlaneseq
    %v1348 = vshrl.u32 %v1347, 7
    %v1349 = vsub.s32 %v1237, %v1348
    %v1350 = vrot.slane %v1188, %v1349
    %v1351 = vlaneseq
    %v1352 = vshrl.u32 %v1351, 7
    %v1353 = vsub.s32 %v1242, %v1352
    %v1354 = vrot.slane %v1189, %v1353
    %v1355 = vsel %vm1247, %v1354, %v1350
    %v1356 = vlaneseq
    %v1357 = vshrl.u32 %v1356, 7
    %v1358 = vsub.s32 %v1249, %v1357
    %v1359 = vrot.slane %v1190, %v1358
    %v1360 = vsel %vm1254, %v1359, %v1355
    %v1361 = vlaneseq
    %v1362 = vshrl.u32 %v1361, 7
    %v1363 = vsub.s32 %v1256, %v1362
    %v1364 = vrot.slane %v1191, %v1363
    %v1365 = vsel %vm1261, %v1364, %v1360
    %v1366 = vlaneseq
    %v1367 = vshrl.u32 %v1366, 7
    %v1368 = vsub.s32 %v1263, %v1367
    %v1369 = vrot.slane %v1192, %v1368
    %v1370 = vsel %vm1268, %v1369, %v1365
    %v1371 = vlaneseq
    %v1372 = vshrl.u32 %v1371, 7
    %v1373 = vsub.s32 %v1270, %v1372
    %v1374 = vrot.slane %v1193, %v1373
    %v1375 = vsel %vm1275, %v1374, %v1370
    %v1376 = vlaneseq
    %v1377 = vshrl.u32 %v1376, 7
    %v1378 = vsub.s32 %v1277, %v1377
    %v1379 = vrot.slane %v1194, %v1378
    %v1380 = vsel %vm1282, %v1379, %v1375
    %v1381 = vlaneseq
    %v1382 = vshrl.u32 %v1381, 7
    %v1383 = vsub.s32 %v1284, %v1382
    %v1384 = vrot.slane %v1195, %v1383
    %v1385 = vsel %vm1289, %v1384, %v1380
    %v1386 = vlaneseq
    %v1387 = vshrl.u32 %v1386, 7
    %v1388 = vsub.s32 %v1291, %v1387
    %v1389 = vrot.slane %v1196, %v1388
    %v1390 = vsel %vm1296, %v1389, %v1385
    %v1391 = vlaneseq
    %v1392 = vshrl.u32 %v1391, 7
    %v1393 = vsub.s32 %v1298, %v1392
    %v1394 = vrot.slane %v1197, %v1393
    %v1395 = vsel %vm1303, %v1394, %v1390
    %v1396 = vlaneseq
    %v1397 = vshrl.u32 %v1396, 7
    %v1398 = vsub.s32 %v1305, %v1397
    %v1399 = vrot.slane %v1198, %v1398
    %v1400 = vsel %vm1310, %v1399, %v1395
    %v1401 = vlaneseq
    %v1402 = vshrl.u32 %v1401, 7
    %v1403 = vsub.s32 %v1312, %v1402
    %v1404 = vrot.slane %v1199, %v1403
    %v1405 = vsel %vm1317, %v1404, %v1400
    %v1406 = vlaneseq
    %v1407 = vshrl.u32 %v1406, 7
    %v1408 = vsub.s32 %v1319, %v1407
    %v1409 = vrot.slane %v1200, %v1408
    %v1410 = vsel %vm1324, %v1409, %v1405
    %v1411 = vlaneseq
    %v1412 = vshrl.u32 %v1411, 7
    %v1413 = vsub.s32 %v1326, %v1412
    %v1414 = vrot.slane %v1201, %v1413
    %v1415 = vsel %vm1331, %v1414, %v1410
    %v1416 = vlaneseq
    %v1417 = vshrl.u32 %v1416, 7
    %v1418 = vsub.s32 %v1333, %v1417
    %v1419 = vrot.slane %v1202, %v1418
    %v1420 = vsel %vm1338, %v1419, %v1415
    %v1421 = vlaneseq
    %v1422 = vshrl.u32 %v1421, 7
    %v1423 = vsub.s32 %v1340, %v1422
    %v1424 = vrot.slane %v1203, %v1423
    %v1425 = vsel %vm1345, %v1424, %v1420
    %vm1426 = vcmask 1041409
    %v1427 = vsel %vm1426, %v1425, %v1346
    %1429 = vst [vmem:[#allocation6] sm:$0x3] %v1427
    // Predicated region
    $region35: #{tpu_custom_call.1} parent=1 // pred_check
      _
    $region36: #{tpu_custom_call.1} parent=1 // pred_check_branch
      %1431 = sbr.rel (0) target = $region38
    $region37: #{tpu_custom_call.1} parent=1 // pred_region
      %s1433 = ssub.s32 32, 32
      %1434 = vsyncadd [#allocation7], %s1433
      %s1436 = sshll.u32 [#allocation6], 4
      %s1437 = int_to_ptr.vmem [resolvable:$true] %s1436
      %1439 = dma.vmem_to_hbm [thread:$0]  %s1437, 32, %s4, [#allocation7]
    $region38: #{tpu_custom_call.1} parent=1 // pred_fallthru
      _
    // Predicated region
    $region39: #{tpu_custom_call.1} parent=1 // pred_check
      _
    $region40: #{tpu_custom_call.1} parent=1 // pred_check_branch
      %1441 = sbr.rel (0) target = $region42
    $region41: #{tpu_custom_call.1} parent=1 // pred_region
      %1442 = dma.done [#allocation7], 32
    $region42: #{tpu_custom_call.1} parent=1 // pred_fallthru
      _
    %1443 = vsyncpa [#allocation7], 1
  %1444 = vsyncmov [#allocation3]
  %s1445 = vpop.sfrf %1444
  %p1446 = scmp.eq.s32.totalorder %s1445, 0
  %p1447 = pneg %p1446
  %1449 = shalt.err (%p1447)

</llo_original>
